<compile_context>
chip_gen: v5e
topology: v5e:2x2
jax: 0.10.0
libtpu: 0.0.40
codegen_flags: <defaults>
</compile_context>

<pallas_src>
import functools
import itertools

import jax
import jax.numpy as jnp
from jax.experimental import pallas as pl
from jax.experimental.pallas import tpu as pltpu

_BIG = 1e30  # sentinel for "shift invalid / too few measurements"


def _shift_l1_kernel(shifts, radius, C_total, H, W, ignore_value, min_measurements,
                     pred_ref, lab_ref, out_ref, sums_ref, cnts_ref):
    """Grid = (sample n [parallel], channel-tile ct [arbitrary]).

    pred_ref : (c_tile, H, W)  predictions tile
    lab_ref  : (c_tile, H, W)  matching labels tile (unpadded)
    out_ref  : (8, 128)        per-sample loss broadcast into one lane-dense tile
    sums_ref : (S, 1)  VMEM    per-shift masked-|diff| partial sums
    cnts_ref : (S, 1)  VMEM    per-shift valid-pixel counts
    """
    ct = pl.program_id(1)

    @pl.when(ct == 0)
    def _init():
        sums_ref[...] = jnp.zeros_like(sums_ref)
        if ignore_value is not None:
            cnts_ref[...] = jnp.zeros_like(cnts_ref)
        else:
            # Counts are analytic (every in-window pixel of every channel is valid):
            # write them once; the hot loop never touches cnts_ref.
            for s, (dy, dx) in enumerate(shifts):
                val = float(C_total
                            * (H - abs(dy - radius))
                            * (W - abs(dx - radius)))
                cnts_ref[s:s + 1, :] = jnp.full((1, 1), val, jnp.float32)

    for s, (dy, dx) in enumerate(shifts):
        oy, ox = dy - radius, dx - radius
        # Valid prediction window for this shift; the out-of-image part of the shift
        # is excluded from the window, exactly matching the zero-padded-mask reference.
        ph0, ph1 = max(0, -oy), H - max(0, oy)
        pw0, pw1 = max(0, -ox), W - max(0, ox)
        lh0, lh1 = ph0 + oy, ph1 + oy
        lw0, lw1 = pw0 + ox, pw1 + ox

        lab = lab_ref[:, lh0:lh1, lw0:lw1]            # (c_tile, h_s, w_s)
        prd = pred_ref[:, ph0:ph1, pw0:pw1]           # (c_tile, h_s, w_s)
        d = jnp.abs(lab - prd)
        if ignore_value is not None:
            vm = (lab != jnp.float32(ignore_value)).astype(jnp.float32)
            d = d * vm

        # Staged reductions (channel -> row -> lane) keep shapes 2-D for the VPU/XLU.
        # NOTE: if profiling shows this VALU-bound in a VMEM-resident-label regime,
        # the (channel,row) reduction can be routed through the MXU with a ones-row dot.
        d_w = jnp.sum(jnp.sum(d, axis=0), axis=0, keepdims=True)     # (1, w_s)
        d_s = jnp.sum(d_w, axis=1, keepdims=True)                    # (1, 1)
        sums_ref[s:s + 1, :] = sums_ref[s:s + 1, :] + d_s

        if ignore_value is not None:
            v_w = jnp.sum(jnp.sum(vm, axis=0), axis=0, keepdims=True)
            v_s = jnp.sum(v_w, axis=1, keepdims=True)                # (1, 1)
            cnts_ref[s:s + 1, :] = cnts_ref[s:s + 1, :] + v_s

    @pl.when(ct == pl.num_programs(1) - 1)
    def _finalize():
        tot = sums_ref[...]                                          # (S, 1)
        cnt = cnts_ref[...]                                          # (S, 1)
        mean = tot / jnp.maximum(cnt, jnp.float32(1.0))
        mean = jnp.where(cnt >= jnp.float32(min_measurements), mean, jnp.float32(_BIG))
        best = jnp.min(mean, axis=0, keepdims=True)                  # (1, 1)
        best = jnp.where(best < jnp.float32(_BIG * 0.5), best, jnp.float32(0.0))
        out_ref[...] = jnp.zeros_like(out_ref) + best                # lane-dense broadcast


def shift_l1_loss(predictions, labels, *, ignore_value=None, min_measurements=5,
                  radius=1, c_tile=None):
    predictions = predictions.astype(jnp.float32)
    labels = labels.astype(jnp.float32)
    N, C, H, W = predictions.shape
    assert labels.shape == (N, C, H, W)
    assert radius < H and radius < W, "radius must be smaller than the spatial dims"
    side = 2 * radius + 1
    shifts = tuple(itertools.product(range(side), repeat=2))
    S = len(shifts)

    # Channel tile sized against a fixed VMEM budget (both inputs are double-buffered).
    if c_tile is None:
        budget = 16 * 1024 * 1024
        per_channel = 2 * H * W * 4            # pred + labels, f32
        c_tile = 1
        for d in range(1, C + 1):
            if C % d == 0 and 2 * d * per_channel <= budget:
                c_tile = d
    assert C % c_tile == 0, "c_tile must divide C"
    n_ct = C // c_tile
    # TODO(synk): for very large H*W with C == 1, add an H-tile grid axis (needs a
    # 2*radius-row halo per tile); not required at current sizes.
    # (Optional: stream pred/labels as bf16 and upcast in-kernel to halve DMA bytes.)

    kernel = functools.partial(
        _shift_l1_kernel, shifts, radius, C, H, W,
        None if ignore_value is None else float(ignore_value),
        float(min_measurements))

    out = pl.pallas_call(
        kernel,
        out_shape=jax.ShapeDtypeStruct((N, 8, 128), jnp.float32),
        grid_spec=pltpu.PrefetchScalarGridSpec(
            num_scalar_prefetch=0,
            grid=(N, n_ct),
            in_specs=[
                pl.BlockSpec((None, c_tile, H, W), lambda n, ct: (n, ct, 0, 0)),
                pl.BlockSpec((None, c_tile, H, W), lambda n, ct: (n, ct, 0, 0)),
            ],
            out_specs=pl.BlockSpec((None, 8, 128), lambda n, ct: (n, 0, 0)),
            scratch_shapes=[
                pltpu.VMEM((S, 1), jnp.float32),   # per-shift |diff| partial sums
                pltpu.VMEM((S, 1), jnp.float32),   # per-shift valid-pixel counts
            ],
        ),
        compiler_params=pltpu.CompilerParams(
            # Sample axis feeds both TensorCores on v7x; the channel-tile axis carries
            # the scratch accumulation so it must stay "arbitrary".
            dimension_semantics=("parallel", "arbitrary"),
            vmem_limit_bytes=32 * 1024 * 1024,
        ),
    )(predictions, labels)

    return jnp.mean(out[:, 0, 0])


def _reference_shift_l1(pred, labels, ignore_value, min_measurements, radius):
    """Pure-JAX reference of the reconstructed ShiftL1Loss forward."""
    N, C, H, W = pred.shape
    side = 2 * radius + 1
    if ignore_value is None:
        valid = jnp.ones_like(labels)
    else:
        valid = (labels != ignore_value).astype(jnp.float32)
    pad = ((0, 0), (0, 0), (radius, radius), (radius, radius))
    labp = jnp.pad(labels, pad)
    mskp = jnp.pad(valid, pad)
    best = jnp.full((N,), float(_BIG), dtype=jnp.float32)
    for dy, dx in itertools.product(range(side), repeat=2):
        sl = labp[:, :, dy:dy + H, dx:dx + W]
        sm = mskp[:, :, dy:dy + H, dx:dx + W]
        diff = jnp.abs(sl - pred) * sm
        sums = jnp.sum(diff, axis=(1, 2, 3))
        cnts = jnp.sum(sm, axis=(1, 2, 3))
        mean = sums / jnp.maximum(cnts, 1.0)
        mean = jnp.where(cnts >= float(min_measurements), mean, float(_BIG))
        best = jnp.minimum(best, mean)
    best = jnp.where(best < float(_BIG) * 0.5, best, 0.0)
    return jnp.mean(best)


if __name__ == "__main__":
    key = jax.random.PRNGKey(0)
    k1, k2 = jax.random.split(key)
    N, C, H, W = 2, 4, 16, 16
    predictions = jax.random.normal(k1, (N, C, H, W), dtype=jnp.float32)
    labels = jax.random.normal(k2, (N, C, H, W), dtype=jnp.float32)

    # ShiftL1Loss() defaults: ignore_value=None, min_measurements=5, radius=1
    out = shift_l1_loss(predictions, labels)
    out = jax.block_until_ready(out)
    ref = _reference_shift_l1(predictions, labels, None, 5, 1)
    assert jnp.allclose(out, ref, rtol=1e-5, atol=1e-5), (out, ref)

    # Exercise the channel-tiled accumulation path (grid = (N, C), c_tile = 1).
    out_tiled = jax.block_until_ready(shift_l1_loss(predictions, labels, c_tile=1))
    assert jnp.allclose(out_tiled, ref, rtol=1e-5, atol=1e-5), (out_tiled, ref)

    # Exercise the ignore_value path (validity mask recomputed in-kernel).
    labels_iv = labels.at[:, :, ::3, ::5].set(-7.0)
    out_iv = jax.block_until_ready(
        shift_l1_loss(predictions, labels_iv, ignore_value=-7.0))
    ref_iv = _reference_shift_l1(predictions, labels_iv, -7.0, 5, 1)
    assert jnp.allclose(out_iv, ref_iv, rtol=1e-5, atol=1e-5), (out_iv, ref_iv)

    # ignore_value path with channel tiling (count accumulation across tiles).
    out_iv_t = jax.block_until_ready(
        shift_l1_loss(predictions, labels_iv, ignore_value=-7.0, c_tile=2))
    assert jnp.allclose(out_iv_t, ref_iv, rtol=1e-5, atol=1e-5), (out_iv_t, ref_iv)

    print("KERNEL_OK")
</pallas_src>

<mosaic_0001>
module attributes {stable_mosaic.version = 11 : i64} {
  func.func @_shift_l1_kernel(%arg0: i32, %arg1: i32, %arg2: memref<1x4x16x16xf32, #tpu.memory_space<vmem>>, %arg3: memref<1x4x16x16xf32, #tpu.memory_space<vmem>>, %arg4: memref<1x8x128xf32, #tpu.memory_space<vmem>>, %arg5: memref<9x1xf32, #tpu.memory_space<vmem>>, %arg6: memref<9x1xf32, #tpu.memory_space<vmem>>) attributes {dimension_semantics = [#tpu.dimension_semantics<parallel>, #tpu.dimension_semantics<arbitrary>], iteration_bounds = array<i64: 2, 1>, scalar_prefetch = 0 : i64, scratch_operands = 2 : i64, tpu.core_type = #tpu.core_type<tc>, window_params = [{transform_indices = @transform_0, window_bounds = array<i64: 1, 4, 16, 16>}, {transform_indices = @transform_1, window_bounds = array<i64: 1, 4, 16, 16>}, {transform_indices = @transform_2, window_bounds = array<i64: 1, 8, 128>}]} {
    %c0_i32 = arith.constant 0 : i32
    %0 = arith.cmpi eq, %arg1, %c0_i32 : i32
    %1 = arith.extui %0 : i1 to i32
    %c0_i32_0 = arith.constant 0 : i32
    %2 = arith.cmpi ne, %1, %c0_i32_0 : i32
    scf.if %2 {
      %cst_128 = arith.constant 0.000000e+00 : f32
      %132 = vector.broadcast %cst_128 : f32 to vector<9x1xf32>
      %c0_129 = arith.constant 0 : index
      %c0_130 = arith.constant 0 : index
      %133 = vector.load %arg5[%c0_129, %c0_130] : memref<9x1xf32, #tpu.memory_space<vmem>>, vector<9x1xf32>
      tpu.vector_store %arg5[%c0_129, %c0_130], %132 {strides = array<i32>} : memref<9x1xf32, #tpu.memory_space<vmem>>, vector<9x1xf32>,
      %cst_131 = arith.constant 9.000000e+02 : f32
      %134 = vector.broadcast %cst_131 : f32 to vector<1x1xf32>
      %c0_132 = arith.constant 0 : index
      %c0_133 = arith.constant 0 : index
      %135 = vector.load %arg6[%c0_132, %c0_133] : memref<9x1xf32, #tpu.memory_space<vmem>>, vector<1x1xf32>
      tpu.vector_store %arg6[%c0_132, %c0_133], %134 {strides = array<i32>} : memref<9x1xf32, #tpu.memory_space<vmem>>, vector<1x1xf32>,
      %cst_134 = arith.constant 9.600000e+02 : f32
      %136 = vector.broadcast %cst_134 : f32 to vector<1x1xf32>
      %c1_135 = arith.constant 1 : index
      %c0_136 = arith.constant 0 : index
      %137 = vector.load %arg6[%c1_135, %c0_136] : memref<9x1xf32, #tpu.memory_space<vmem>>, vector<1x1xf32>
      tpu.vector_store %arg6[%c1_135, %c0_136], %136 {strides = array<i32>} : memref<9x1xf32, #tpu.memory_space<vmem>>, vector<1x1xf32>,
      %cst_137 = arith.constant 9.000000e+02 : f32
      %138 = vector.broadcast %cst_137 : f32 to vector<1x1xf32>
      %c2_138 = arith.constant 2 : index
      %c0_139 = arith.constant 0 : index
      %139 = vector.load %arg6[%c2_138, %c0_139] : memref<9x1xf32, #tpu.memory_space<vmem>>, vector<1x1xf32>
      tpu.vector_store %arg6[%c2_138, %c0_139], %138 {strides = array<i32>} : memref<9x1xf32, #tpu.memory_space<vmem>>, vector<1x1xf32>,
      %cst_140 = arith.constant 9.600000e+02 : f32
      %140 = vector.broadcast %cst_140 : f32 to vector<1x1xf32>
      %c3_141 = arith.constant 3 : index
      %c0_142 = arith.constant 0 : index
      %141 = vector.load %arg6[%c3_141, %c0_142] : memref<9x1xf32, #tpu.memory_space<vmem>>, vector<1x1xf32>
      tpu.vector_store %arg6[%c3_141, %c0_142], %140 {strides = array<i32>} : memref<9x1xf32, #tpu.memory_space<vmem>>, vector<1x1xf32>,
      %cst_143 = arith.constant 1.024000e+03 : f32
      %142 = vector.broadcast %cst_143 : f32 to vector<1x1xf32>
      %c4_144 = arith.constant 4 : index
      %c0_145 = arith.constant 0 : index
      %143 = vector.load %arg6[%c4_144, %c0_145] : memref<9x1xf32, #tpu.memory_space<vmem>>, vector<1x1xf32>
      tpu.vector_store %arg6[%c4_144, %c0_145], %142 {strides = array<i32>} : memref<9x1xf32, #tpu.memory_space<vmem>>, vector<1x1xf32>,
      %cst_146 = arith.constant 9.600000e+02 : f32
      %144 = vector.broadcast %cst_146 : f32 to vector<1x1xf32>
      %c5_147 = arith.constant 5 : index
      %c0_148 = arith.constant 0 : index
      %145 = vector.load %arg6[%c5_147, %c0_148] : memref<9x1xf32, #tpu.memory_space<vmem>>, vector<1x1xf32>
      tpu.vector_store %arg6[%c5_147, %c0_148], %144 {strides = array<i32>} : memref<9x1xf32, #tpu.memory_space<vmem>>, vector<1x1xf32>,
      %cst_149 = arith.constant 9.000000e+02 : f32
      %146 = vector.broadcast %cst_149 : f32 to vector<1x1xf32>
      %c6_150 = arith.constant 6 : index
      %c0_151 = arith.constant 0 : index
      %147 = vector.load %arg6[%c6_150, %c0_151] : memref<9x1xf32, #tpu.memory_space<vmem>>, vector<1x1xf32>
      tpu.vector_store %arg6[%c6_150, %c0_151], %146 {strides = array<i32>} : memref<9x1xf32, #tpu.memory_space<vmem>>, vector<1x1xf32>,
      %cst_152 = arith.constant 9.600000e+02 : f32
      %148 = vector.broadcast %cst_152 : f32 to vector<1x1xf32>
      %c7_153 = arith.constant 7 : index
      %c0_154 = arith.constant 0 : index
      %149 = vector.load %arg6[%c7_153, %c0_154] : memref<9x1xf32, #tpu.memory_space<vmem>>, vector<1x1xf32>
      tpu.vector_store %arg6[%c7_153, %c0_154], %148 {strides = array<i32>} : memref<9x1xf32, #tpu.memory_space<vmem>>, vector<1x1xf32>,
      %cst_155 = arith.constant 9.000000e+02 : f32
      %150 = vector.broadcast %cst_155 : f32 to vector<1x1xf32>
      %c8_156 = arith.constant 8 : index
      %c0_157 = arith.constant 0 : index
      %151 = vector.load %arg6[%c8_156, %c0_157] : memref<9x1xf32, #tpu.memory_space<vmem>>, vector<1x1xf32>
      tpu.vector_store %arg6[%c8_156, %c0_157], %150 {strides = array<i32>} : memref<9x1xf32, #tpu.memory_space<vmem>>, vector<1x1xf32>,
    } else {
    }
    %c0 = arith.constant 0 : index
    %c0_1 = arith.constant 0 : index
    %c0_2 = arith.constant 0 : index
    %c0_3 = arith.constant 0 : index
    %3 = vector.load %arg3[%c0, %c0_1, %c0_2, %c0_3] : memref<1x4x16x16xf32, #tpu.memory_space<vmem>>, vector<1x4x15x15xf32>
    %4 = vector.shape_cast %3 : vector<1x4x15x15xf32> to vector<4x15x15xf32>
    %c0_4 = arith.constant 0 : index
    %c0_5 = arith.constant 0 : index
    %c1 = arith.constant 1 : index
    %c1_6 = arith.constant 1 : index
    %5 = vector.load %arg2[%c0_4, %c0_5, %c1, %c1_6] : memref<1x4x16x16xf32, #tpu.memory_space<vmem>>, vector<1x4x15x15xf32>
    %6 = vector.shape_cast %5 : vector<1x4x15x15xf32> to vector<4x15x15xf32>
    %7 = arith.subf %4, %6 : vector<4x15x15xf32>
    %8 = math.absf %7 : vector<4x15x15xf32>
    %cst = arith.constant dense<0.000000e+00> : vector<15x15xf32>
    %9 = vector.multi_reduction <add>, %8, %cst [0] : vector<4x15x15xf32> to vector<15x15xf32>
    %cst_7 = arith.constant dense<0.000000e+00> : vector<15xf32>
    %10 = vector.multi_reduction <add>, %9, %cst_7 [0] : vector<15x15xf32> to vector<15xf32>
    %11 = vector.shape_cast %10 : vector<15xf32> to vector<1x15xf32>
    %cst_8 = arith.constant dense<0.000000e+00> : vector<1xf32>
    %12 = vector.multi_reduction <add>, %11, %cst_8 [1] : vector<1x15xf32> to vector<1xf32>
    %13 = vector.shape_cast %12 : vector<1xf32> to vector<1x1xf32>
    %c0_9 = arith.constant 0 : index
    %c0_10 = arith.constant 0 : index
    %14 = vector.load %arg5[%c0_9, %c0_10] : memref<9x1xf32, #tpu.memory_space<vmem>>, vector<1x1xf32>
    %15 = arith.addf %14, %13 : vector<1x1xf32>
    %c0_11 = arith.constant 0 : index
    %c0_12 = arith.constant 0 : index
    %16 = vector.load %arg5[%c0_11, %c0_12] : memref<9x1xf32, #tpu.memory_space<vmem>>, vector<1x1xf32>
    tpu.vector_store %arg5[%c0_11, %c0_12], %15 {strides = array<i32>} : memref<9x1xf32, #tpu.memory_space<vmem>>, vector<1x1xf32>,
    %c0_13 = arith.constant 0 : index
    %c0_14 = arith.constant 0 : index
    %c0_15 = arith.constant 0 : index
    %c0_16 = arith.constant 0 : index
    %17 = vector.load %arg3[%c0_13, %c0_14, %c0_15, %c0_16] : memref<1x4x16x16xf32, #tpu.memory_space<vmem>>, vector<1x4x15x16xf32>
    %18 = vector.shape_cast %17 : vector<1x4x15x16xf32> to vector<4x15x16xf32>
    %c0_17 = arith.constant 0 : index
    %c0_18 = arith.constant 0 : index
    %c1_19 = arith.constant 1 : index
    %c0_20 = arith.constant 0 : index
    %19 = vector.load %arg2[%c0_17, %c0_18, %c1_19, %c0_20] : memref<1x4x16x16xf32, #tpu.memory_space<vmem>>, vector<1x4x15x16xf32>
    %20 = vector.shape_cast %19 : vector<1x4x15x16xf32> to vector<4x15x16xf32>
    %21 = arith.subf %18, %20 : vector<4x15x16xf32>
    %22 = math.absf %21 : vector<4x15x16xf32>
    %cst_21 = arith.constant dense<0.000000e+00> : vector<15x16xf32>
    %23 = vector.multi_reduction <add>, %22, %cst_21 [0] : vector<4x15x16xf32> to vector<15x16xf32>
    %cst_22 = arith.constant dense<0.000000e+00> : vector<16xf32>
    %24 = vector.multi_reduction <add>, %23, %cst_22 [0] : vector<15x16xf32> to vector<16xf32>
    %25 = vector.shape_cast %24 : vector<16xf32> to vector<1x16xf32>
    %cst_23 = arith.constant dense<0.000000e+00> : vector<1xf32>
    %26 = vector.multi_reduction <add>, %25, %cst_23 [1] : vector<1x16xf32> to vector<1xf32>
    %27 = vector.shape_cast %26 : vector<1xf32> to vector<1x1xf32>
    %c1_24 = arith.constant 1 : index
    %c0_25 = arith.constant 0 : index
    %28 = vector.load %arg5[%c1_24, %c0_25] : memref<9x1xf32, #tpu.memory_space<vmem>>, vector<1x1xf32>
    %29 = arith.addf %28, %27 : vector<1x1xf32>
    %c1_26 = arith.constant 1 : index
    %c0_27 = arith.constant 0 : index
    %30 = vector.load %arg5[%c1_26, %c0_27] : memref<9x1xf32, #tpu.memory_space<vmem>>, vector<1x1xf32>
    tpu.vector_store %arg5[%c1_26, %c0_27], %29 {strides = array<i32>} : memref<9x1xf32, #tpu.memory_space<vmem>>, vector<1x1xf32>,
    %c0_28 = arith.constant 0 : index
    %c0_29 = arith.constant 0 : index
    %c0_30 = arith.constant 0 : index
    %c1_31 = arith.constant 1 : index
    %31 = vector.load %arg3[%c0_28, %c0_29, %c0_30, %c1_31] : memref<1x4x16x16xf32, #tpu.memory_space<vmem>>, vector<1x4x15x15xf32>
    %32 = vector.shape_cast %31 : vector<1x4x15x15xf32> to vector<4x15x15xf32>
    %c0_32 = arith.constant 0 : index
    %c0_33 = arith.constant 0 : index
    %c1_34 = arith.constant 1 : index
    %c0_35 = arith.constant 0 : index
    %33 = vector.load %arg2[%c0_32, %c0_33, %c1_34, %c0_35] : memref<1x4x16x16xf32, #tpu.memory_space<vmem>>, vector<1x4x15x15xf32>
    %34 = vector.shape_cast %33 : vector<1x4x15x15xf32> to vector<4x15x15xf32>
    %35 = arith.subf %32, %34 : vector<4x15x15xf32>
    %36 = math.absf %35 : vector<4x15x15xf32>
    %cst_36 = arith.constant dense<0.000000e+00> : vector<15x15xf32>
    %37 = vector.multi_reduction <add>, %36, %cst_36 [0] : vector<4x15x15xf32> to vector<15x15xf32>
    %cst_37 = arith.constant dense<0.000000e+00> : vector<15xf32>
    %38 = vector.multi_reduction <add>, %37, %cst_37 [0] : vector<15x15xf32> to vector<15xf32>
    %39 = vector.shape_cast %38 : vector<15xf32> to vector<1x15xf32>
    %cst_38 = arith.constant dense<0.000000e+00> : vector<1xf32>
    %40 = vector.multi_reduction <add>, %39, %cst_38 [1] : vector<1x15xf32> to vector<1xf32>
    %41 = vector.shape_cast %40 : vector<1xf32> to vector<1x1xf32>
    %c2 = arith.constant 2 : index
    %c0_39 = arith.constant 0 : index
    %42 = vector.load %arg5[%c2, %c0_39] : memref<9x1xf32, #tpu.memory_space<vmem>>, vector<1x1xf32>
    %43 = arith.addf %42, %41 : vector<1x1xf32>
    %c2_40 = arith.constant 2 : index
    %c0_41 = arith.constant 0 : index
    %44 = vector.load %arg5[%c2_40, %c0_41] : memref<9x1xf32, #tpu.memory_space<vmem>>, vector<1x1xf32>
    tpu.vector_store %arg5[%c2_40, %c0_41], %43 {strides = array<i32>} : memref<9x1xf32, #tpu.memory_space<vmem>>, vector<1x1xf32>,
    %c0_42 = arith.constant 0 : index
    %c0_43 = arith.constant 0 : index
    %c0_44 = arith.constant 0 : index
    %c0_45 = arith.constant 0 : index
    %45 = vector.load %arg3[%c0_42, %c0_43, %c0_44, %c0_45] : memref<1x4x16x16xf32, #tpu.memory_space<vmem>>, vector<1x4x16x15xf32>
    %46 = vector.shape_cast %45 : vector<1x4x16x15xf32> to vector<4x16x15xf32>
    %c0_46 = arith.constant 0 : index
    %c0_47 = arith.constant 0 : index
    %c0_48 = arith.constant 0 : index
    %c1_49 = arith.constant 1 : index
    %47 = vector.load %arg2[%c0_46, %c0_47, %c0_48, %c1_49] : memref<1x4x16x16xf32, #tpu.memory_space<vmem>>, vector<1x4x16x15xf32>
    %48 = vector.shape_cast %47 : vector<1x4x16x15xf32> to vector<4x16x15xf32>
    %49 = arith.subf %46, %48 : vector<4x16x15xf32>
    %50 = math.absf %49 : vector<4x16x15xf32>
    %cst_50 = arith.constant dense<0.000000e+00> : vector<16x15xf32>
    %51 = vector.multi_reduction <add>, %50, %cst_50 [0] : vector<4x16x15xf32> to vector<16x15xf32>
    %cst_51 = arith.constant dense<0.000000e+00> : vector<15xf32>
    %52 = vector.multi_reduction <add>, %51, %cst_51 [0] : vector<16x15xf32> to vector<15xf32>
    %53 = vector.shape_cast %52 : vector<15xf32> to vector<1x15xf32>
    %cst_52 = arith.constant dense<0.000000e+00> : vector<1xf32>
    %54 = vector.multi_reduction <add>, %53, %cst_52 [1] : vector<1x15xf32> to vector<1xf32>
    %55 = vector.shape_cast %54 : vector<1xf32> to vector<1x1xf32>
    %c3 = arith.constant 3 : index
    %c0_53 = arith.constant 0 : index
    %56 = vector.load %arg5[%c3, %c0_53] : memref<9x1xf32, #tpu.memory_space<vmem>>, vector<1x1xf32>
    %57 = arith.addf %56, %55 : vector<1x1xf32>
    %c3_54 = arith.constant 3 : index
    %c0_55 = arith.constant 0 : index
    %58 = vector.load %arg5[%c3_54, %c0_55] : memref<9x1xf32, #tpu.memory_space<vmem>>, vector<1x1xf32>
    tpu.vector_store %arg5[%c3_54, %c0_55], %57 {strides = array<i32>} : memref<9x1xf32, #tpu.memory_space<vmem>>, vector<1x1xf32>,
    %c0_56 = arith.constant 0 : index
    %c0_57 = arith.constant 0 : index
    %c0_58 = arith.constant 0 : index
    %c0_59 = arith.constant 0 : index
    %59 = vector.load %arg3[%c0_56, %c0_57, %c0_58, %c0_59] : memref<1x4x16x16xf32, #tpu.memory_space<vmem>>, vector<1x4x16x16xf32>
    %60 = vector.shape_cast %59 : vector<1x4x16x16xf32> to vector<4x16x16xf32>
    %c0_60 = arith.constant 0 : index
    %c0_61 = arith.constant 0 : index
    %c0_62 = arith.constant 0 : index
    %c0_63 = arith.constant 0 : index
    %61 = vector.load %arg2[%c0_60, %c0_61, %c0_62, %c0_63] : memref<1x4x16x16xf32, #tpu.memory_space<vmem>>, vector<1x4x16x16xf32>
    %62 = vector.shape_cast %61 : vector<1x4x16x16xf32> to vector<4x16x16xf32>
    %63 = arith.subf %60, %62 : vector<4x16x16xf32>
    %64 = math.absf %63 : vector<4x16x16xf32>
    %cst_64 = arith.constant dense<0.000000e+00> : vector<16x16xf32>
    %65 = vector.multi_reduction <add>, %64, %cst_64 [0] : vector<4x16x16xf32> to vector<16x16xf32>
    %cst_65 = arith.constant dense<0.000000e+00> : vector<16xf32>
    %66 = vector.multi_reduction <add>, %65, %cst_65 [0] : vector<16x16xf32> to vector<16xf32>
    %67 = vector.shape_cast %66 : vector<16xf32> to vector<1x16xf32>
    %cst_66 = arith.constant dense<0.000000e+00> : vector<1xf32>
    %68 = vector.multi_reduction <add>, %67, %cst_66 [1] : vector<1x16xf32> to vector<1xf32>
    %69 = vector.shape_cast %68 : vector<1xf32> to vector<1x1xf32>
    %c4 = arith.constant 4 : index
    %c0_67 = arith.constant 0 : index
    %70 = vector.load %arg5[%c4, %c0_67] : memref<9x1xf32, #tpu.memory_space<vmem>>, vector<1x1xf32>
    %71 = arith.addf %70, %69 : vector<1x1xf32>
    %c4_68 = arith.constant 4 : index
    %c0_69 = arith.constant 0 : index
    %72 = vector.load %arg5[%c4_68, %c0_69] : memref<9x1xf32, #tpu.memory_space<vmem>>, vector<1x1xf32>
    tpu.vector_store %arg5[%c4_68, %c0_69], %71 {strides = array<i32>} : memref<9x1xf32, #tpu.memory_space<vmem>>, vector<1x1xf32>,
    %c0_70 = arith.constant 0 : index
    %c0_71 = arith.constant 0 : index
    %c0_72 = arith.constant 0 : index
    %c1_73 = arith.constant 1 : index
    %73 = vector.load %arg3[%c0_70, %c0_71, %c0_72, %c1_73] : memref<1x4x16x16xf32, #tpu.memory_space<vmem>>, vector<1x4x16x15xf32>
    %74 = vector.shape_cast %73 : vector<1x4x16x15xf32> to vector<4x16x15xf32>
    %c0_74 = arith.constant 0 : index
    %c0_75 = arith.constant 0 : index
    %c0_76 = arith.constant 0 : index
    %c0_77 = arith.constant 0 : index
    %75 = vector.load %arg2[%c0_74, %c0_75, %c0_76, %c0_77] : memref<1x4x16x16xf32, #tpu.memory_space<vmem>>, vector<1x4x16x15xf32>
    %76 = vector.shape_cast %75 : vector<1x4x16x15xf32> to vector<4x16x15xf32>
    %77 = arith.subf %74, %76 : vector<4x16x15xf32>
    %78 = math.absf %77 : vector<4x16x15xf32>
    %cst_78 = arith.constant dense<0.000000e+00> : vector<16x15xf32>
    %79 = vector.multi_reduction <add>, %78, %cst_78 [0] : vector<4x16x15xf32> to vector<16x15xf32>
    %cst_79 = arith.constant dense<0.000000e+00> : vector<15xf32>
    %80 = vector.multi_reduction <add>, %79, %cst_79 [0] : vector<16x15xf32> to vector<15xf32>
    %81 = vector.shape_cast %80 : vector<15xf32> to vector<1x15xf32>
    %cst_80 = arith.constant dense<0.000000e+00> : vector<1xf32>
    %82 = vector.multi_reduction <add>, %81, %cst_80 [1] : vector<1x15xf32> to vector<1xf32>
    %83 = vector.shape_cast %82 : vector<1xf32> to vector<1x1xf32>
    %c5 = arith.constant 5 : index
    %c0_81 = arith.constant 0 : index
    %84 = vector.load %arg5[%c5, %c0_81] : memref<9x1xf32, #tpu.memory_space<vmem>>, vector<1x1xf32>
    %85 = arith.addf %84, %83 : vector<1x1xf32>
    %c5_82 = arith.constant 5 : index
    %c0_83 = arith.constant 0 : index
    %86 = vector.load %arg5[%c5_82, %c0_83] : memref<9x1xf32, #tpu.memory_space<vmem>>, vector<1x1xf32>
    tpu.vector_store %arg5[%c5_82, %c0_83], %85 {strides = array<i32>} : memref<9x1xf32, #tpu.memory_space<vmem>>, vector<1x1xf32>,
    %c0_84 = arith.constant 0 : index
    %c0_85 = arith.constant 0 : index
    %c1_86 = arith.constant 1 : index
    %c0_87 = arith.constant 0 : index
    %87 = vector.load %arg3[%c0_84, %c0_85, %c1_86, %c0_87] : memref<1x4x16x16xf32, #tpu.memory_space<vmem>>, vector<1x4x15x15xf32>
    %88 = vector.shape_cast %87 : vector<1x4x15x15xf32> to vector<4x15x15xf32>
    %c0_88 = arith.constant 0 : index
    %c0_89 = arith.constant 0 : index
    %c0_90 = arith.constant 0 : index
    %c1_91 = arith.constant 1 : index
    %89 = vector.load %arg2[%c0_88, %c0_89, %c0_90, %c1_91] : memref<1x4x16x16xf32, #tpu.memory_space<vmem>>, vector<1x4x15x15xf32>
    %90 = vector.shape_cast %89 : vector<1x4x15x15xf32> to vector<4x15x15xf32>
    %91 = arith.subf %88, %90 : vector<4x15x15xf32>
    %92 = math.absf %91 : vector<4x15x15xf32>
    %cst_92 = arith.constant dense<0.000000e+00> : vector<15x15xf32>
    %93 = vector.multi_reduction <add>, %92, %cst_92 [0] : vector<4x15x15xf32> to vector<15x15xf32>
    %cst_93 = arith.constant dense<0.000000e+00> : vector<15xf32>
    %94 = vector.multi_reduction <add>, %93, %cst_93 [0] : vector<15x15xf32> to vector<15xf32>
    %95 = vector.shape_cast %94 : vector<15xf32> to vector<1x15xf32>
    %cst_94 = arith.constant dense<0.000000e+00> : vector<1xf32>
    %96 = vector.multi_reduction <add>, %95, %cst_94 [1] : vector<1x15xf32> to vector<1xf32>
    %97 = vector.shape_cast %96 : vector<1xf32> to vector<1x1xf32>
    %c6 = arith.constant 6 : index
    %c0_95 = arith.constant 0 : index
    %98 = vector.load %arg5[%c6, %c0_95] : memref<9x1xf32, #tpu.memory_space<vmem>>, vector<1x1xf32>
    %99 = arith.addf %98, %97 : vector<1x1xf32>
    %c6_96 = arith.constant 6 : index
    %c0_97 = arith.constant 0 : index
    %100 = vector.load %arg5[%c6_96, %c0_97] : memref<9x1xf32, #tpu.memory_space<vmem>>, vector<1x1xf32>
    tpu.vector_store %arg5[%c6_96, %c0_97], %99 {strides = array<i32>} : memref<9x1xf32, #tpu.memory_space<vmem>>, vector<1x1xf32>,
    %c0_98 = arith.constant 0 : index
    %c0_99 = arith.constant 0 : index
    %c1_100 = arith.constant 1 : index
    %c0_101 = arith.constant 0 : index
    %101 = vector.load %arg3[%c0_98, %c0_99, %c1_100, %c0_101] : memref<1x4x16x16xf32, #tpu.memory_space<vmem>>, vector<1x4x15x16xf32>
    %102 = vector.shape_cast %101 : vector<1x4x15x16xf32> to vector<4x15x16xf32>
    %c0_102 = arith.constant 0 : index
    %c0_103 = arith.constant 0 : index
    %c0_104 = arith.constant 0 : index
    %c0_105 = arith.constant 0 : index
    %103 = vector.load %arg2[%c0_102, %c0_103, %c0_104, %c0_105] : memref<1x4x16x16xf32, #tpu.memory_space<vmem>>, vector<1x4x15x16xf32>
    %104 = vector.shape_cast %103 : vector<1x4x15x16xf32> to vector<4x15x16xf32>
    %105 = arith.subf %102, %104 : vector<4x15x16xf32>
    %106 = math.absf %105 : vector<4x15x16xf32>
    %cst_106 = arith.constant dense<0.000000e+00> : vector<15x16xf32>
    %107 = vector.multi_reduction <add>, %106, %cst_106 [0] : vector<4x15x16xf32> to vector<15x16xf32>
    %cst_107 = arith.constant dense<0.000000e+00> : vector<16xf32>
    %108 = vector.multi_reduction <add>, %107, %cst_107 [0] : vector<15x16xf32> to vector<16xf32>
    %109 = vector.shape_cast %108 : vector<16xf32> to vector<1x16xf32>
    %cst_108 = arith.constant dense<0.000000e+00> : vector<1xf32>
    %110 = vector.multi_reduction <add>, %109, %cst_108 [1] : vector<1x16xf32> to vector<1xf32>
    %111 = vector.shape_cast %110 : vector<1xf32> to vector<1x1xf32>
    %c7 = arith.constant 7 : index
    %c0_109 = arith.constant 0 : index
    %112 = vector.load %arg5[%c7, %c0_109] : memref<9x1xf32, #tpu.memory_space<vmem>>, vector<1x1xf32>
    %113 = arith.addf %112, %111 : vector<1x1xf32>
    %c7_110 = arith.constant 7 : index
    %c0_111 = arith.constant 0 : index
    %114 = vector.load %arg5[%c7_110, %c0_111] : memref<9x1xf32, #tpu.memory_space<vmem>>, vector<1x1xf32>
    tpu.vector_store %arg5[%c7_110, %c0_111], %113 {strides = array<i32>} : memref<9x1xf32, #tpu.memory_space<vmem>>, vector<1x1xf32>,
    %c0_112 = arith.constant 0 : index
    %c0_113 = arith.constant 0 : index
    %c1_114 = arith.constant 1 : index
    %c1_115 = arith.constant 1 : index
    %115 = vector.load %arg3[%c0_112, %c0_113, %c1_114, %c1_115] : memref<1x4x16x16xf32, #tpu.memory_space<vmem>>, vector<1x4x15x15xf32>
    %116 = vector.shape_cast %115 : vector<1x4x15x15xf32> to vector<4x15x15xf32>
    %c0_116 = arith.constant 0 : index
    %c0_117 = arith.constant 0 : index
    %c0_118 = arith.constant 0 : index
    %c0_119 = arith.constant 0 : index
    %117 = vector.load %arg2[%c0_116, %c0_117, %c0_118, %c0_119] : memref<1x4x16x16xf32, #tpu.memory_space<vmem>>, vector<1x4x15x15xf32>
    %118 = vector.shape_cast %117 : vector<1x4x15x15xf32> to vector<4x15x15xf32>
    %119 = arith.subf %116, %118 : vector<4x15x15xf32>
    %120 = math.absf %119 : vector<4x15x15xf32>
    %cst_120 = arith.constant dense<0.000000e+00> : vector<15x15xf32>
    %121 = vector.multi_reduction <add>, %120, %cst_120 [0] : vector<4x15x15xf32> to vector<15x15xf32>
    %cst_121 = arith.constant dense<0.000000e+00> : vector<15xf32>
    %122 = vector.multi_reduction <add>, %121, %cst_121 [0] : vector<15x15xf32> to vector<15xf32>
    %123 = vector.shape_cast %122 : vector<15xf32> to vector<1x15xf32>
    %cst_122 = arith.constant dense<0.000000e+00> : vector<1xf32>
    %124 = vector.multi_reduction <add>, %123, %cst_122 [1] : vector<1x15xf32> to vector<1xf32>
    %125 = vector.shape_cast %124 : vector<1xf32> to vector<1x1xf32>
    %c8 = arith.constant 8 : index
    %c0_123 = arith.constant 0 : index
    %126 = vector.load %arg5[%c8, %c0_123] : memref<9x1xf32, #tpu.memory_space<vmem>>, vector<1x1xf32>
    %127 = arith.addf %126, %125 : vector<1x1xf32>
    %c8_124 = arith.constant 8 : index
    %c0_125 = arith.constant 0 : index
    %128 = vector.load %arg5[%c8_124, %c0_125] : memref<9x1xf32, #tpu.memory_space<vmem>>, vector<1x1xf32>
    tpu.vector_store %arg5[%c8_124, %c0_125], %127 {strides = array<i32>} : memref<9x1xf32, #tpu.memory_space<vmem>>, vector<1x1xf32>,
    %c0_i32_126 = arith.constant 0 : i32
    %129 = arith.cmpi eq, %arg1, %c0_i32_126 : i32
    %130 = arith.extui %129 : i1 to i32
    %c0_i32_127 = arith.constant 0 : i32
    %131 = arith.cmpi ne, %130, %c0_i32_127 : i32
    scf.if %131 {
      %c0_128 = arith.constant 0 : index
      %c0_129 = arith.constant 0 : index
      %132 = vector.load %arg5[%c0_128, %c0_129] : memref<9x1xf32, #tpu.memory_space<vmem>>, vector<9x1xf32>
      %c0_130 = arith.constant 0 : index
      %c0_131 = arith.constant 0 : index
      %133 = vector.load %arg6[%c0_130, %c0_131] : memref<9x1xf32, #tpu.memory_space<vmem>>, vector<9x1xf32>
      %cst_132 = arith.constant 1.000000e+00 : f32
      %134 = vector.broadcast %cst_132 : f32 to vector<9x1xf32>
      %135 = arith.maximumf %133, %134 : vector<9x1xf32>
      %136 = arith.divf %132, %135 : vector<9x1xf32>
      %cst_133 = arith.constant 5.000000e+00 : f32
      %137 = vector.broadcast %cst_133 : f32 to vector<9x1xf32>
      %138 = arith.cmpf oge, %133, %137 : vector<9x1xf32>
      %cst_134 = arith.constant 1.000000e+30 : f32
      %139 = vector.broadcast %cst_134 : f32 to vector<9x1xf32>
      %140 = arith.select %138, %136, %139 : vector<9x1xi1>, vector<9x1xf32>
      %cst_135 = arith.constant dense<0x7F800000> : vector<1xf32>
      %141 = vector.multi_reduction <minimumf>, %140, %cst_135 [0] : vector<9x1xf32> to vector<1xf32>
      %142 = vector.shape_cast %141 : vector<1xf32> to vector<1x1xf32>
      %cst_136 = arith.constant 5.000000e+29 : f32
      %143 = vector.broadcast %cst_136 : f32 to vector<1x1xf32>
      %144 = arith.cmpf olt, %142, %143 : vector<1x1xf32>
      %cst_137 = arith.constant 0.000000e+00 : f32
      %145 = vector.broadcast %cst_137 : f32 to vector<1x1xf32>
      %146 = arith.select %144, %142, %145 : vector<1x1xi1>, vector<1x1xf32>
      %cst_138 = arith.constant 0.000000e+00 : f32
      %147 = vector.broadcast %cst_138 : f32 to vector<8x128xf32>
      %148 = vector.broadcast %146 : vector<1x1xf32> to vector<8x128xf32>
      %149 = arith.addf %147, %148 : vector<8x128xf32>
      %c0_139 = arith.constant 0 : index
      %c0_140 = arith.constant 0 : index
      %c0_141 = arith.constant 0 : index
      %150 = vector.load %arg4[%c0_139, %c0_140, %c0_141] : memref<1x8x128xf32, #tpu.memory_space<vmem>>, vector<1x8x128xf32>
      %151 = vector.shape_cast %150 : vector<1x8x128xf32> to vector<8x128xf32>
      %152 = vector.shape_cast %149 : vector<8x128xf32> to vector<1x8x128xf32>
      tpu.vector_store %arg4[%c0_139, %c0_140, %c0_141], %152 {strides = array<i32>} : memref<1x8x128xf32, #tpu.memory_space<vmem>>, vector<1x8x128xf32>,
    } else {
    }
    return
  }
  func.func @transform_0(%arg0: i32, %arg1: i32) -> (i32, i32, i32, i32) {
    %c0_i32 = arith.constant 0 : i32
    %c0_i32_0 = arith.constant 0 : i32
    %c0_i32_1 = arith.constant 0 : i32
    return %arg0, %arg1, %c0_i32, %c0_i32_0 : i32, i32, i32, i32
  }
  func.func @transform_1(%arg0: i32, %arg1: i32) -> (i32, i32, i32, i32) {
    %c0_i32 = arith.constant 0 : i32
    %c0_i32_0 = arith.constant 0 : i32
    %c0_i32_1 = arith.constant 0 : i32
    return %arg0, %arg1, %c0_i32, %c0_i32_0 : i32, i32, i32, i32
  }
  func.func @transform_2(%arg0: i32, %arg1: i32) -> (i32, i32, i32) {
    %c0_i32 = arith.constant 0 : i32
    %c0_i32_0 = arith.constant 0 : i32
    %c0_i32_1 = arith.constant 0 : i32
    return %arg0, %c0_i32, %c0_i32_0 : i32, i32, i32
  }
}

</mosaic_0001>

<llo_original>
// kernel: tpu_custom_call.1
$region0: #{tpu_custom_call.1}
  #allocation0 [shape = 'u32[]', space=smem, size = 0x4, offset = 0x4, fixed_abs, tag = 'smem constant byte address 0x4 - core index']
  #allocation1 [shape = 'u32[72,128]{1,0:T(1,128)}', space=vmem, size = 0x9000, scoped, tag = 'internal scratch']
  #allocation2 [shape = 'f32[9,1]{1,0:T(8,128)}', space=vmem, size = 0x2000, scoped, tag = 'scratch operand']
  #allocation3 [shape = 'f32[9,1]{1,0:T(8,128)}', space=vmem, size = 0x2000, scoped, tag = 'scratch operand']
  %s0 = inlined_call_operand.hbm [shape: f32[2,4,16,16], index: 0, kind: input, shape index: {}]
  %s1 = inlined_call_operand.hbm [shape: f32[2,4,16,16], index: 1, kind: input, shape index: {}]
  %s2 = inlined_call_operand.hbm [shape: f32[2,8,128], index: 2, kind: output, shape index: {}]
  %s3 = sld [smem:[#allocation0]]
  $region57: #{tpu_custom_call.1} parent=0
    _
  %s5 = ssub.s32 1, %s3
  %s6 = scalar_select 0, %s5, %s3
  $region1: #{tpu_custom_call.1} parent=0
    #allocation4 [shape = 'u8[65536]{0}', space=vmem, size = 0x10000, scoped, tag = 'input window, operand 0']
    #allocation5 [shape = 's32[2]{0}', space=sflag, size = 0x8, scoped, tag = 'scoped memory for tpu_custom_call.1']
    #allocation6 [shape = 's32[2]{0}', space=sflag, size = 0x8, scoped, tag = 'scoped memory for tpu_custom_call.1']
    #allocation7 [shape = 'u8[65536]{0}', space=vmem, size = 0x10000, scoped, tag = 'input window, operand 1']
    #allocation8 [shape = 's32[2]{0}', space=sflag, size = 0x8, scoped, tag = 'scoped memory for tpu_custom_call.1']
    #allocation9 [shape = 'u8[8192]{0}', space=vmem, size = 0x2000, scoped, tag = 'output window, operand 0']
    %7 = vsyncpa [#allocation5], 0
    %s8 = scalar_lea.sflag [#allocation5], 1
    %9 = vsyncpa %s8, 0
    %10 = vsyncpa [#allocation8], 0
    %s11 = scalar_lea.sflag [#allocation8], 1
    %12 = vsyncpa %s11, 0
    %13 = vsyncpa [#allocation6], 0
    %s14 = scalar_lea.sflag [#allocation6], 1
    %15 = vsyncpa %s14, 0
    loop: start=0, step=1, limit=4
    $region2: #{tpu_custom_call.1} parent=1 // loop_pre_header
      _
    $region3: #{tpu_custom_call.1} parent=1 // loop_header
      %s17 = sphi 0, %s21
      %p18 = scmp.ge.s32.totalorder %s17, 4
      %s24 = sphi 0, %s36
      %s25 = sphi 0, %s32
      %s26 = sphi 0, %s24
      %s27 = sphi 0, %s25
      %s28 = sphi 0, %s26
      %s29 = sphi 0, %s27
      %s41 = sphi 0, %s43
      %s44 = sphi 0, %s41
      %s45 = sphi 0, %s44
      %s61 = sphi 0, %s45
      %s69 = sphi 0, %s71
      %s72 = sphi 0, %s69
      %s73 = sphi 0, %s72
      %s89 = sphi 0, %s73
      %s95 = sphi 0, %s97
      %s98 = sphi 0, %s95
      %s99 = sphi 0, %s98
      %s115 = sphi 0, %s99
    $region4: #{tpu_custom_call.1} parent=1 // loop_header_branch
      %20 = sbr.rel (%p18) target = $region8
    $region5: #{tpu_custom_call.1} parent=1 // loop_body
      %s22 = ssub.s32 %s17, 1
      %s23 = ssub.s32 %s17, 2
      %s30 = sadd.s32 1, %s25
      %p31 = scmp.ge.s32.totalorder %s30, 1
      %s32 = scalar_select %p31, 0, %s30
      %s33 = sadd.s32 1, %s24
      %s34 = scalar_select %p31, %s33, %s24
      %p35 = scmp.ge.s32.totalorder %s34, 2
      %s36 = scalar_select %p35, 0, %s34
      %s37 = ssub.s32 %s24, %s36
      %s38 = ssub.s32 %s25, %s32
      %s39 = sor.u32 %s37, %s38
      %p40 = scmp.eq.s32.totalorder %s39, 0
      %s42 = sadd.s32 %s41, 1
      %s43 = scalar_select %p40, %s41, %s42
      %p46 = pneg %p40
      %p47 = scmp.eq.s32.totalorder %s17, 1
      %p48 = por %p46, %p47
      %p49 = scmp.ne.s32.totalorder %s41, %s44
      %p50 = scmp.eq.s32.totalorder %s17, 0
      %p51 = por %p49, %p50
      %p52 = scmp.ne.s32.totalorder %s41, %s44
      %p53 = scmp.eq.s32.totalorder %s22, 1
      %p54 = por %p52, %p53
      %p55 = scmp.ne.s32.totalorder %s44, %s45
      %p56 = scmp.eq.s32.totalorder %s22, 0
      %p57 = por %p55, %p56
      %p58 = scmp.ne.s32.totalorder %s44, %s45
      %p59 = scmp.eq.s32.totalorder %s23, 1
      %p60 = por %p58, %p59
      %p62 = scmp.ne.s32.totalorder %s45, %s61
      %p63 = scmp.eq.s32.totalorder %s23, 0
      %p64 = por %p62, %p63
      %s65 = ssub.s32 %s24, %s36
      %s66 = ssub.s32 %s25, %s32
      %s67 = sor.u32 %s65, %s66
      %p68 = scmp.eq.s32.totalorder %s67, 0
      %s70 = sadd.s32 %s69, 1
      %s71 = scalar_select %p68, %s69, %s70
      %p74 = pneg %p68
      %p75 = scmp.eq.s32.totalorder %s17, 1
      %p76 = por %p74, %p75
      %p77 = scmp.ne.s32.totalorder %s69, %s72
      %p78 = scmp.eq.s32.totalorder %s17, 0
      %p79 = por %p77, %p78
      %p80 = scmp.ne.s32.totalorder %s69, %s72
      %p81 = scmp.eq.s32.totalorder %s22, 1
      %p82 = por %p80, %p81
      %p83 = scmp.ne.s32.totalorder %s72, %s73
      %p84 = scmp.eq.s32.totalorder %s22, 0
      %p85 = por %p83, %p84
      %p86 = scmp.ne.s32.totalorder %s72, %s73
      %p87 = scmp.eq.s32.totalorder %s23, 1
      %p88 = por %p86, %p87
      %p90 = scmp.ne.s32.totalorder %s73, %s89
      %p91 = scmp.eq.s32.totalorder %s23, 0
      %p92 = por %p90, %p91
      %s93 = ssub.s32 %s24, %s36
      %p94 = scmp.eq.s32.totalorder %s93, 0
      %s96 = sadd.s32 %s95, 1
      %s97 = scalar_select %p94, %s95, %s96
      %p100 = pneg %p94
      %p101 = scmp.eq.s32.totalorder %s17, 1
      %p102 = por %p100, %p101
      %p103 = scmp.ne.s32.totalorder %s95, %s98
      %p104 = scmp.eq.s32.totalorder %s17, 0
      %p105 = por %p103, %p104
      %p106 = scmp.ne.s32.totalorder %s95, %s98
      %p107 = scmp.eq.s32.totalorder %s22, 1
      %p108 = por %p106, %p107
      %p109 = scmp.ne.s32.totalorder %s98, %s99
      %p110 = scmp.eq.s32.totalorder %s22, 0
      %p111 = por %p109, %p110
      %p112 = scmp.ne.s32.totalorder %s98, %s99
      %p113 = scmp.eq.s32.totalorder %s23, 1
      %p114 = por %p112, %p113
      %p116 = scmp.ne.s32.totalorder %s99, %s115
      %p117 = scmp.eq.s32.totalorder %s23, 0
      %p118 = por %p116, %p117
      %p119 = scmp.le.s32.totalorder 1, %s17
      %p120 = scmp.lt.s32.totalorder %s17, 3
      %p121 = pnand %p119, %p120
      %p122 = pneg %p121
      // Predicated region
      $region9: #{tpu_custom_call.1} parent=5 // pred_check
        _
      $region10: #{tpu_custom_call.1} parent=5 // pred_check_branch
        %124 = sbr.rel (%p121) target = $region12
      $region11: #{tpu_custom_call.1} parent=5 // pred_region
        %s125 = ssub.s32 %s17, 1
      $region12: #{tpu_custom_call.1} parent=5 // pred_fallthru
        _
      %p126 = scmp.lt.s32.totalorder %s17, 2
      // Predicated region
      $region13: #{tpu_custom_call.1} parent=5 // pred_check
        %p127 = pneg %p126
      $region14: #{tpu_custom_call.1} parent=5 // pred_check_branch
        %129 = sbr.rel (%p127) target = $region16
      $region15: #{tpu_custom_call.1} parent=5 // pred_region
        // Predicated region
        $region17: #{tpu_custom_call.1} parent=15 // pred_check
          %p130 = pneg %p51
        $region18: #{tpu_custom_call.1} parent=15 // pred_check_branch
          %132 = sbr.rel (%p130) target = $region20
        $region19: #{tpu_custom_call.1} parent=15 // pred_region
          %s133 = sand.u32 %s41, 1
          %s134 = scalar_lea.sflag [#allocation5], %s133
          %s135 = sand.u32 %s41, 1
          %s136 = smul.addr %s135, 64
          %s137 = scalar_lea.vmem [#allocation4], %s136
          %s138 = smul.u32 4, %s25
          %140 = vsyncadd %s134, 0
          %s141 = smul.addr %s138, 2
          %s142 = smul.addr %s24, 8
          %s143 = sadd.s32 %s141, %s142
          %s144 = smul.addr %s143, 8
          %s145 = scalar_lea.hbm %s0, %s144
          %s146 = sshll.u32 %s145, 4
          %s147 = int_to_ptr.hbm [resolvable:$true] %s146
          %s148 = sshll.u32 %s137, 4
          %s149 = int_to_ptr.vmem [resolvable:$true] %s148
          %154 = dma.hbm_to_vmem [thread:$0]  %s147, 1024, %s149, %s134, 128, 128, 8
        $region20: #{tpu_custom_call.1} parent=15 // pred_fallthru
          _
        // Predicated region
        $region21: #{tpu_custom_call.1} parent=15 // pred_check
          %p155 = pneg %p79
        $region22: #{tpu_custom_call.1} parent=15 // pred_check_branch
          %157 = sbr.rel (%p155) target = $region24
        $region23: #{tpu_custom_call.1} parent=15 // pred_region
          %s158 = sand.u32 %s69, 1
          %s159 = scalar_lea.sflag [#allocation8], %s158
          %s160 = sand.u32 %s69, 1
          %s161 = smul.addr %s160, 64
          %s162 = scalar_lea.vmem [#allocation7], %s161
          %s163 = smul.u32 4, %s25
          %165 = vsyncadd %s159, 0
          %s166 = smul.addr %s163, 2
          %s167 = smul.addr %s24, 8
          %s168 = sadd.s32 %s166, %s167
          %s169 = smul.addr %s168, 8
          %s170 = scalar_lea.hbm %s1, %s169
          %s171 = sshll.u32 %s170, 4
          %s172 = int_to_ptr.hbm [resolvable:$true] %s171
          %s173 = sshll.u32 %s162, 4
          %s174 = int_to_ptr.vmem [resolvable:$true] %s173
          %179 = dma.hbm_to_vmem [thread:$0]  %s172, 1024, %s174, %s159, 128, 128, 8
        $region24: #{tpu_custom_call.1} parent=15 // pred_fallthru
          _
      $region16: #{tpu_custom_call.1} parent=5 // pred_fallthru
        _
      %p180 = scmp.le.s32.totalorder 1, %s17
      %p181 = scmp.lt.s32.totalorder %s17, 3
      %p182 = pnand %p180, %p181
      %p183 = pneg %p182
      // Predicated region
      $region25: #{tpu_custom_call.1} parent=5 // pred_check
        _
      $region26: #{tpu_custom_call.1} parent=5 // pred_check_branch
        %185 = sbr.rel (%p182) target = $region28
      $region27: #{tpu_custom_call.1} parent=5 // pred_region
        %s186 = ssub.s32 %s17, 1
        %s187 = sand.u32 %s44, 1
        %s188 = scalar_lea.sflag [#allocation5], %s187
        %s189 = sand.u32 %s44, 1
        %s190 = smul.addr %s189, 64
        %s191 = scalar_lea.vmem [#allocation4], %s190
        // Predicated region
        $region29: #{tpu_custom_call.1} parent=27 // pred_check
          %p192 = pneg %p57
        $region30: #{tpu_custom_call.1} parent=27 // pred_check_branch
          %194 = sbr.rel (%p192) target = $region32
        $region31: #{tpu_custom_call.1} parent=27 // pred_region
          %196 = dma.done %s188, 1024
        $region32: #{tpu_custom_call.1} parent=27 // pred_fallthru
          _
        %s197 = sand.u32 %s72, 1
        %s198 = scalar_lea.sflag [#allocation8], %s197
        %s199 = sand.u32 %s72, 1
        %s200 = smul.addr %s199, 64
        %s201 = scalar_lea.vmem [#allocation7], %s200
        // Predicated region
        $region33: #{tpu_custom_call.1} parent=27 // pred_check
          %p202 = pneg %p85
        $region34: #{tpu_custom_call.1} parent=27 // pred_check_branch
          %204 = sbr.rel (%p202) target = $region36
        $region35: #{tpu_custom_call.1} parent=27 // pred_region
          %206 = dma.done %s198, 1024
        $region36: #{tpu_custom_call.1} parent=27 // pred_fallthru
          _
        %s207 = sand.u32 %s44, 1
        %s208 = scalar_lea.sflag [#allocation5], %s207
        %s209 = sand.u32 %s44, 1
        %s210 = smul.addr %s209, 64
        %s211 = scalar_lea.vmem [#allocation4], %s210
        %p212 = pneg %p57
        %p213 = pneg %p54
        %s214 = sand.u32 %s72, 1
        %s215 = scalar_lea.sflag [#allocation8], %s214
        %s216 = sand.u32 %s72, 1
        %s217 = smul.addr %s216, 64
        %s218 = scalar_lea.vmem [#allocation7], %s217
        %p219 = pneg %p85
        %p220 = pneg %p82
        %p221 = pneg %p111
        %p222 = pneg %p108
        %s223 = sand.u32 %s98, 1
        %s224 = scalar_lea.sflag [#allocation6], %s223
        %s225 = sand.u32 %s98, 1
        %s226 = smul.addr %s225, 8
        %s227 = scalar_lea.vmem [#allocation9], %s226
        %s228 = smul.u32 4, %s27
        %s229 = smul.u32 4, %s27
        %p230 = scmp.eq.s32.totalorder %s27, 0
        // Predicated region
        $region37: #{tpu_custom_call.1} parent=27 // pred_check
          %p231 = pneg %p230
        $region38: #{tpu_custom_call.1} parent=27 // pred_check_branch
          %233 = sbr.rel (%p231) target = $region40
        $region39: #{tpu_custom_call.1} parent=27 // pred_region
          %vm234 = vcmask 7168
          %235 = vst.msk [vmem:[#allocation2] sm:$0xff] %vm234, 0.0
          %vm236 = vcmask 0
          %237 = vst.msk [vmem:[#allocation2 + $0x8] sm:$0x1] %vm236, 0.0
          %238 = vst.msk [vmem:[#allocation3] sm:$0x1] %vm236, 900.0
          %239 = vst.msk [vmem:[#allocation3 + $0x1] sm:$0x1] %vm236, 960.0
          %240 = vst.msk [vmem:[#allocation3 + $0x2] sm:$0x1] %vm236, 900.0
          %241 = vst.msk [vmem:[#allocation3 + $0x3] sm:$0x1] %vm236, 960.0
          %242 = vst.msk [vmem:[#allocation3 + $0x4] sm:$0x1] %vm236, 1024.0
          %243 = vst.msk [vmem:[#allocation3 + $0x5] sm:$0x1] %vm236, 960.0
          %244 = vst.msk [vmem:[#allocation3 + $0x6] sm:$0x1] %vm236, 900.0
          %245 = vst.msk [vmem:[#allocation3 + $0x7] sm:$0x1] %vm236, 960.0
          %246 = vst.msk [vmem:[#allocation3 + $0x8] sm:$0x1] %vm236, 900.0
        $region40: #{tpu_custom_call.1} parent=27 // pred_fallthru
          _
        %v247 = vld [vmem:[%s201] sm:$0xff]
        %v248 = vld [vmem:[%s201 + $0x8] sm:$0x7f]
        %v249 = vld [vmem:[%s201 + $0x10] sm:$0xff]
        %v250 = vld [vmem:[%s201 + $0x18] sm:$0x7f]
        %v251 = vld [vmem:[%s201 + $0x20] sm:$0xff]
        %v252 = vld [vmem:[%s201 + $0x28] sm:$0x7f]
        %v253 = vld [vmem:[%s201 + $0x30] sm:$0xff]
        %v254 = vld [vmem:[%s201 + $0x38] sm:$0x7f]
        %v255 = vld [vmem:[%s191 + $0x1] sm:$0xff]
        %v256 = vld [vmem:[%s191 + $0x9] sm:$0x7f]
        %v257 = vld [vmem:[%s191 + $0x11] sm:$0xff]
        %v258 = vld [vmem:[%s191 + $0x19] sm:$0x7f]
        %v259 = vld [vmem:[%s191 + $0x21] sm:$0xff]
        %v260 = vld [vmem:[%s191 + $0x29] sm:$0x7f]
        %v261 = vld [vmem:[%s191 + $0x31] sm:$0xff]
        %v262 = vld [vmem:[%s191 + $0x39] sm:$0x7f]
        %271 = vrot.lane.b32.xlu0 %v255, 127
        %v272 = vpop.permute.xlu0 %271
        %273 = vrot.lane.b32.xlu0 %v256, 127
        %v274 = vpop.permute.xlu0 %273
        %275 = vrot.lane.b32.xlu0 %v257, 127
        %v276 = vpop.permute.xlu0 %275
        %277 = vrot.lane.b32.xlu0 %v258, 127
        %v278 = vpop.permute.xlu0 %277
        %279 = vrot.lane.b32.xlu0 %v259, 127
        %v280 = vpop.permute.xlu0 %279
        %281 = vrot.lane.b32.xlu0 %v260, 127
        %v282 = vpop.permute.xlu0 %281
        %283 = vrot.lane.b32.xlu0 %v261, 127
        %v284 = vpop.permute.xlu0 %283
        %285 = vrot.lane.b32.xlu0 %v262, 127
        %v286 = vpop.permute.xlu0 %285
        %v295 = vsub.f32 %v247, %v272
        %v296 = vsub.f32 %v248, %v274
        %v297 = vsub.f32 %v249, %v276
        %v298 = vsub.f32 %v250, %v278
        %v299 = vsub.f32 %v251, %v280
        %v300 = vsub.f32 %v252, %v282
        %v301 = vsub.f32 %v253, %v284
        %v302 = vsub.f32 %v254, %v286
        %v303 = vand.u32 2147483647, %v295
        %v304 = vand.u32 2147483647, %v296
        %v305 = vand.u32 2147483647, %v297
        %v306 = vand.u32 2147483647, %v298
        %v307 = vand.u32 2147483647, %v299
        %v308 = vand.u32 2147483647, %v300
        %v309 = vand.u32 2147483647, %v301
        %v310 = vand.u32 2147483647, %v302
        %vm311 = vcmask 121856
        %v312 = vsel %vm311, %v303, 0.0
        %v313 = vsel %vm311, %v305, 0.0
        %v314 = vadd.f32 %v312, %v313
        %v315 = vsel %vm311, %v307, 0.0
        %v316 = vadd.f32 %v314, %v315
        %v317 = vsel %vm311, %v309, 0.0
        %v318 = vadd.f32 %v316, %v317
        %vm319 = vcmask 120832
        %v320 = vsel %vm319, %v304, 0.0
        %v321 = vsel %vm319, %v306, 0.0
        %v322 = vadd.f32 %v320, %v321
        %v323 = vsel %vm319, %v308, 0.0
        %v324 = vadd.f32 %v322, %v323
        %v325 = vsel %vm319, %v310, 0.0
        %v326 = vadd.f32 %v324, %v325
        %v327 = vsel %vm311, %v318, 0.0
        %v328 = vsel %vm319, %v326, 0.0
        %v329 = vadd.f32 %v327, %v328
        %v330 = vrot.slane %v329, 4
        %v331 = vadd.f32 %v329, %v330
        %v332 = vrot.slane %v331, 2
        %v333 = vadd.f32 %v331, %v332
        %v334 = vrot.slane %v333, 1
        %v335 = vadd.f32 %v333, %v334
        %v336 = vsel %vm311, %v335, 0.0
        %337 = vadd.xlane.f32.xlu0 %v336
        %v338 = vpop.xlane.xlu0 %337
        %v339 = vld [vmem:[#allocation2] sm:$0x1]
        %v340 = vadd.f32 %v339, %v338
        %vm341 = vcmask 0
        %342 = vst.msk [vmem:[#allocation2] sm:$0x1] %vm341, %v340
        %v343 = vld [vmem:[%s201] sm:$0xff]
        %v344 = vld [vmem:[%s201 + $0x8] sm:$0x7f]
        %v345 = vld [vmem:[%s201 + $0x10] sm:$0xff]
        %v346 = vld [vmem:[%s201 + $0x18] sm:$0x7f]
        %v347 = vld [vmem:[%s201 + $0x20] sm:$0xff]
        %v348 = vld [vmem:[%s201 + $0x28] sm:$0x7f]
        %v349 = vld [vmem:[%s201 + $0x30] sm:$0xff]
        %v350 = vld [vmem:[%s201 + $0x38] sm:$0x7f]
        %v351 = vld [vmem:[%s191 + $0x1] sm:$0xff]
        %v352 = vld [vmem:[%s191 + $0x9] sm:$0x7f]
        %v353 = vld [vmem:[%s191 + $0x11] sm:$0xff]
        %v354 = vld [vmem:[%s191 + $0x19] sm:$0x7f]
        %v355 = vld [vmem:[%s191 + $0x21] sm:$0xff]
        %v356 = vld [vmem:[%s191 + $0x29] sm:$0x7f]
        %v357 = vld [vmem:[%s191 + $0x31] sm:$0xff]
        %v358 = vld [vmem:[%s191 + $0x39] sm:$0x7f]
        %v359 = vsub.f32 %v343, %v351
        %v360 = vsub.f32 %v344, %v352
        %v361 = vsub.f32 %v345, %v353
        %v362 = vsub.f32 %v346, %v354
        %v363 = vsub.f32 %v347, %v355
        %v364 = vsub.f32 %v348, %v356
        %v365 = vsub.f32 %v349, %v357
        %v366 = vsub.f32 %v350, %v358
        %v367 = vand.u32 2147483647, %v359
        %v368 = vand.u32 2147483647, %v360
        %v369 = vand.u32 2147483647, %v361
        %v370 = vand.u32 2147483647, %v362
        %v371 = vand.u32 2147483647, %v363
        %v372 = vand.u32 2147483647, %v364
        %v373 = vand.u32 2147483647, %v365
        %v374 = vand.u32 2147483647, %v366
        %vm375 = vcmask 130048
        %v376 = vsel %vm375, %v367, 0.0
        %v377 = vsel %vm375, %v369, 0.0
        %v378 = vadd.f32 %v376, %v377
        %v379 = vsel %vm375, %v371, 0.0
        %v380 = vadd.f32 %v378, %v379
        %v381 = vsel %vm375, %v373, 0.0
        %v382 = vadd.f32 %v380, %v381
        %vm383 = vcmask 129024
        %v384 = vsel %vm383, %v368, 0.0
        %v385 = vsel %vm383, %v370, 0.0
        %v386 = vadd.f32 %v384, %v385
        %v387 = vsel %vm383, %v372, 0.0
        %v388 = vadd.f32 %v386, %v387
        %v389 = vsel %vm383, %v374, 0.0
        %v390 = vadd.f32 %v388, %v389
        %v391 = vsel %vm375, %v382, 0.0
        %v392 = vsel %vm383, %v390, 0.0
        %v393 = vadd.f32 %v391, %v392
        %v394 = vrot.slane %v393, 4
        %v395 = vadd.f32 %v393, %v394
        %v396 = vrot.slane %v395, 2
        %v397 = vadd.f32 %v395, %v396
        %v398 = vrot.slane %v397, 1
        %v399 = vadd.f32 %v397, %v398
        %v400 = vsel %vm375, %v399, 0.0
        %401 = vadd.xlane.f32.xlu0 %v400
        %v402 = vpop.xlane.xlu0 %401
        %v403 = vld [vmem:[#allocation2 + $0x1] sm:$0x1]
        %v404 = vadd.f32 %v403, %v402
        %405 = vst.msk [vmem:[#allocation2 + $0x1] sm:$0x1] %vm341, %v404
        %v406 = vld [vmem:[%s201] sm:$0xff]
        %v407 = vld [vmem:[%s201 + $0x8] sm:$0x7f]
        %v408 = vld [vmem:[%s201 + $0x10] sm:$0xff]
        %v409 = vld [vmem:[%s201 + $0x18] sm:$0x7f]
        %v410 = vld [vmem:[%s201 + $0x20] sm:$0xff]
        %v411 = vld [vmem:[%s201 + $0x28] sm:$0x7f]
        %v412 = vld [vmem:[%s201 + $0x30] sm:$0xff]
        %v413 = vld [vmem:[%s201 + $0x38] sm:$0x7f]
        %v414 = vld [vmem:[%s191 + $0x1] sm:$0xff]
        %v415 = vld [vmem:[%s191 + $0x9] sm:$0x7f]
        %v416 = vld [vmem:[%s191 + $0x11] sm:$0xff]
        %v417 = vld [vmem:[%s191 + $0x19] sm:$0x7f]
        %v418 = vld [vmem:[%s191 + $0x21] sm:$0xff]
        %v419 = vld [vmem:[%s191 + $0x29] sm:$0x7f]
        %v420 = vld [vmem:[%s191 + $0x31] sm:$0xff]
        %v421 = vld [vmem:[%s191 + $0x39] sm:$0x7f]
        %430 = vrot.lane.b32.xlu0 %v414, 1
        %v431 = vpop.permute.xlu0 %430
        %432 = vrot.lane.b32.xlu0 %v415, 1
        %v433 = vpop.permute.xlu0 %432
        %434 = vrot.lane.b32.xlu0 %v416, 1
        %v435 = vpop.permute.xlu0 %434
        %436 = vrot.lane.b32.xlu0 %v417, 1
        %v437 = vpop.permute.xlu0 %436
        %438 = vrot.lane.b32.xlu0 %v418, 1
        %v439 = vpop.permute.xlu0 %438
        %440 = vrot.lane.b32.xlu0 %v419, 1
        %v441 = vpop.permute.xlu0 %440
        %442 = vrot.lane.b32.xlu0 %v420, 1
        %v443 = vpop.permute.xlu0 %442
        %444 = vrot.lane.b32.xlu0 %v421, 1
        %v445 = vpop.permute.xlu0 %444
        %v454 = vsub.f32 %v406, %v431
        %v455 = vsub.f32 %v407, %v433
        %v456 = vsub.f32 %v408, %v435
        %v457 = vsub.f32 %v409, %v437
        %v458 = vsub.f32 %v410, %v439
        %v459 = vsub.f32 %v411, %v441
        %v460 = vsub.f32 %v412, %v443
        %v461 = vsub.f32 %v413, %v445
        %v462 = vand.u32 2147483647, %v454
        %v463 = vand.u32 2147483647, %v455
        %v464 = vand.u32 2147483647, %v456
        %v465 = vand.u32 2147483647, %v457
        %v466 = vand.u32 2147483647, %v458
        %v467 = vand.u32 2147483647, %v459
        %v468 = vand.u32 2147483647, %v460
        %v469 = vand.u32 2147483647, %v461
        %vm470 = vcmask 130056
        %v471 = vsel %vm470, %v462, 0.0
        %v472 = vsel %vm470, %v464, 0.0
        %v473 = vadd.f32 %v471, %v472
        %v474 = vsel %vm470, %v466, 0.0
        %v475 = vadd.f32 %v473, %v474
        %v476 = vsel %vm470, %v468, 0.0
        %v477 = vadd.f32 %v475, %v476
        %vm478 = vcmask 129032
        %v479 = vsel %vm478, %v463, 0.0
        %v480 = vsel %vm478, %v465, 0.0
        %v481 = vadd.f32 %v479, %v480
        %v482 = vsel %vm478, %v467, 0.0
        %v483 = vadd.f32 %v481, %v482
        %v484 = vsel %vm478, %v469, 0.0
        %v485 = vadd.f32 %v483, %v484
        %v486 = vsel %vm470, %v477, 0.0
        %v487 = vsel %vm478, %v485, 0.0
        %v488 = vadd.f32 %v486, %v487
        %v489 = vrot.slane %v488, 4
        %v490 = vadd.f32 %v488, %v489
        %v491 = vrot.slane %v490, 2
        %v492 = vadd.f32 %v490, %v491
        %v493 = vrot.slane %v492, 1
        %v494 = vadd.f32 %v492, %v493
        %496 = vrot.lane.b32.xlu0 %v494, 127
        %v497 = vpop.permute.xlu0 %496
        %v499 = vsel %vm311, %v497, 0.0
        %500 = vadd.xlane.f32.xlu0 %v499
        %v501 = vpop.xlane.xlu0 %500
        %v502 = vld [vmem:[#allocation2 + $0x2] sm:$0x1]
        %v503 = vadd.f32 %v502, %v501
        %504 = vst.msk [vmem:[#allocation2 + $0x2] sm:$0x1] %vm341, %v503
        %v505 = vld [vmem:[%s201] sm:$0xff]
        %v506 = vld [vmem:[%s201 + $0x8] sm:$0xff]
        %v507 = vld [vmem:[%s201 + $0x10] sm:$0xff]
        %v508 = vld [vmem:[%s201 + $0x18] sm:$0xff]
        %v509 = vld [vmem:[%s201 + $0x20] sm:$0xff]
        %v510 = vld [vmem:[%s201 + $0x28] sm:$0xff]
        %v511 = vld [vmem:[%s201 + $0x30] sm:$0xff]
        %v512 = vld [vmem:[%s201 + $0x38] sm:$0xff]
        %v513 = vld [vmem:[%s191] sm:$0xff]
        %v514 = vld [vmem:[%s191 + $0x8] sm:$0xff]
        %v515 = vld [vmem:[%s191 + $0x10] sm:$0xff]
        %v516 = vld [vmem:[%s191 + $0x18] sm:$0xff]
        %v517 = vld [vmem:[%s191 + $0x20] sm:$0xff]
        %v518 = vld [vmem:[%s191 + $0x28] sm:$0xff]
        %v519 = vld [vmem:[%s191 + $0x30] sm:$0xff]
        %v520 = vld [vmem:[%s191 + $0x38] sm:$0xff]
        %529 = vrot.lane.b32.xlu0 %v513, 127
        %v530 = vpop.permute.xlu0 %529
        %531 = vrot.lane.b32.xlu0 %v514, 127
        %v532 = vpop.permute.xlu0 %531
        %533 = vrot.lane.b32.xlu0 %v515, 127
        %v534 = vpop.permute.xlu0 %533
        %535 = vrot.lane.b32.xlu0 %v516, 127
        %v536 = vpop.permute.xlu0 %535
        %537 = vrot.lane.b32.xlu0 %v517, 127
        %v538 = vpop.permute.xlu0 %537
        %539 = vrot.lane.b32.xlu0 %v518, 127
        %v540 = vpop.permute.xlu0 %539
        %541 = vrot.lane.b32.xlu0 %v519, 127
        %v542 = vpop.permute.xlu0 %541
        %543 = vrot.lane.b32.xlu0 %v520, 127
        %v544 = vpop.permute.xlu0 %543
        %v553 = vsub.f32 %v505, %v530
        %v554 = vsub.f32 %v506, %v532
        %v555 = vsub.f32 %v507, %v534
        %v556 = vsub.f32 %v508, %v536
        %v557 = vsub.f32 %v509, %v538
        %v558 = vsub.f32 %v510, %v540
        %v559 = vsub.f32 %v511, %v542
        %v560 = vsub.f32 %v512, %v544
        %v561 = vand.u32 2147483647, %v553
        %v562 = vand.u32 2147483647, %v554
        %v563 = vand.u32 2147483647, %v555
        %v564 = vand.u32 2147483647, %v556
        %v565 = vand.u32 2147483647, %v557
        %v566 = vand.u32 2147483647, %v558
        %v567 = vand.u32 2147483647, %v559
        %v568 = vand.u32 2147483647, %v560
        %v569 = vsel %vm311, %v561, 0.0
        %v570 = vsel %vm311, %v563, 0.0
        %v571 = vadd.f32 %v569, %v570
        %v572 = vsel %vm311, %v565, 0.0
        %v573 = vadd.f32 %v571, %v572
        %v574 = vsel %vm311, %v567, 0.0
        %v575 = vadd.f32 %v573, %v574
        %v576 = vsel %vm311, %v562, 0.0
        %v577 = vsel %vm311, %v564, 0.0
        %v578 = vadd.f32 %v576, %v577
        %v579 = vsel %vm311, %v566, 0.0
        %v580 = vadd.f32 %v578, %v579
        %v581 = vsel %vm311, %v568, 0.0
        %v582 = vadd.f32 %v580, %v581
        %v583 = vsel %vm311, %v575, 0.0
        %v584 = vsel %vm311, %v582, 0.0
        %v585 = vadd.f32 %v583, %v584
        %v586 = vrot.slane %v585, 4
        %v587 = vadd.f32 %v585, %v586
        %v588 = vrot.slane %v587, 2
        %v589 = vadd.f32 %v587, %v588
        %v590 = vrot.slane %v589, 1
        %v591 = vadd.f32 %v589, %v590
        %v592 = vsel %vm311, %v591, 0.0
        %593 = vadd.xlane.f32.xlu0 %v592
        %v594 = vpop.xlane.xlu0 %593
        %v595 = vld [vmem:[#allocation2 + $0x3] sm:$0x1]
        %v596 = vadd.f32 %v595, %v594
        %597 = vst.msk [vmem:[#allocation2 + $0x3] sm:$0x1] %vm341, %v596
        %v598 = vld [vmem:[%s201] sm:$0xff]
        %v599 = vld [vmem:[%s201 + $0x8] sm:$0xff]
        %v600 = vld [vmem:[%s201 + $0x10] sm:$0xff]
        %v601 = vld [vmem:[%s201 + $0x18] sm:$0xff]
        %v602 = vld [vmem:[%s201 + $0x20] sm:$0xff]
        %v603 = vld [vmem:[%s201 + $0x28] sm:$0xff]
        %v604 = vld [vmem:[%s201 + $0x30] sm:$0xff]
        %v605 = vld [vmem:[%s201 + $0x38] sm:$0xff]
        %v606 = vld [vmem:[%s191] sm:$0xff]
        %v607 = vld [vmem:[%s191 + $0x8] sm:$0xff]
        %v608 = vld [vmem:[%s191 + $0x10] sm:$0xff]
        %v609 = vld [vmem:[%s191 + $0x18] sm:$0xff]
        %v610 = vld [vmem:[%s191 + $0x20] sm:$0xff]
        %v611 = vld [vmem:[%s191 + $0x28] sm:$0xff]
        %v612 = vld [vmem:[%s191 + $0x30] sm:$0xff]
        %v613 = vld [vmem:[%s191 + $0x38] sm:$0xff]
        %v614 = vsub.f32 %v598, %v606
        %v615 = vsub.f32 %v599, %v607
        %v616 = vsub.f32 %v600, %v608
        %v617 = vsub.f32 %v601, %v609
        %v618 = vsub.f32 %v602, %v610
        %v619 = vsub.f32 %v603, %v611
        %v620 = vsub.f32 %v604, %v612
        %v621 = vsub.f32 %v605, %v613
        %v622 = vand.u32 2147483647, %v614
        %v623 = vand.u32 2147483647, %v615
        %v624 = vand.u32 2147483647, %v616
        %v625 = vand.u32 2147483647, %v617
        %v626 = vand.u32 2147483647, %v618
        %v627 = vand.u32 2147483647, %v619
        %v628 = vand.u32 2147483647, %v620
        %v629 = vand.u32 2147483647, %v621
        %v630 = vsel %vm375, %v622, 0.0
        %v631 = vsel %vm375, %v624, 0.0
        %v632 = vadd.f32 %v630, %v631
        %v633 = vsel %vm375, %v626, 0.0
        %v634 = vadd.f32 %v632, %v633
        %v635 = vsel %vm375, %v628, 0.0
        %v636 = vadd.f32 %v634, %v635
        %v637 = vsel %vm375, %v623, 0.0
        %v638 = vsel %vm375, %v625, 0.0
        %v639 = vadd.f32 %v637, %v638
        %v640 = vsel %vm375, %v627, 0.0
        %v641 = vadd.f32 %v639, %v640
        %v642 = vsel %vm375, %v629, 0.0
        %v643 = vadd.f32 %v641, %v642
        %v644 = vsel %vm375, %v636, 0.0
        %v645 = vsel %vm375, %v643, 0.0
        %v646 = vadd.f32 %v644, %v645
        %v647 = vrot.slane %v646, 4
        %v648 = vadd.f32 %v646, %v647
        %v649 = vrot.slane %v648, 2
        %v650 = vadd.f32 %v648, %v649
        %v651 = vrot.slane %v650, 1
        %v652 = vadd.f32 %v650, %v651
        %v653 = vsel %vm375, %v652, 0.0
        %654 = vadd.xlane.f32.xlu0 %v653
        %v655 = vpop.xlane.xlu0 %654
        %v656 = vld [vmem:[#allocation2 + $0x4] sm:$0x1]
        %v657 = vadd.f32 %v656, %v655
        %658 = vst.msk [vmem:[#allocation2 + $0x4] sm:$0x1] %vm341, %v657
        %v659 = vld [vmem:[%s201] sm:$0xff]
        %v660 = vld [vmem:[%s201 + $0x8] sm:$0xff]
        %v661 = vld [vmem:[%s201 + $0x10] sm:$0xff]
        %v662 = vld [vmem:[%s201 + $0x18] sm:$0xff]
        %v663 = vld [vmem:[%s201 + $0x20] sm:$0xff]
        %v664 = vld [vmem:[%s201 + $0x28] sm:$0xff]
        %v665 = vld [vmem:[%s201 + $0x30] sm:$0xff]
        %v666 = vld [vmem:[%s201 + $0x38] sm:$0xff]
        %v667 = vld [vmem:[%s191] sm:$0xff]
        %v668 = vld [vmem:[%s191 + $0x8] sm:$0xff]
        %v669 = vld [vmem:[%s191 + $0x10] sm:$0xff]
        %v670 = vld [vmem:[%s191 + $0x18] sm:$0xff]
        %v671 = vld [vmem:[%s191 + $0x20] sm:$0xff]
        %v672 = vld [vmem:[%s191 + $0x28] sm:$0xff]
        %v673 = vld [vmem:[%s191 + $0x30] sm:$0xff]
        %v674 = vld [vmem:[%s191 + $0x38] sm:$0xff]
        %683 = vrot.lane.b32.xlu0 %v667, 1
        %v684 = vpop.permute.xlu0 %683
        %685 = vrot.lane.b32.xlu0 %v668, 1
        %v686 = vpop.permute.xlu0 %685
        %687 = vrot.lane.b32.xlu0 %v669, 1
        %v688 = vpop.permute.xlu0 %687
        %689 = vrot.lane.b32.xlu0 %v670, 1
        %v690 = vpop.permute.xlu0 %689
        %691 = vrot.lane.b32.xlu0 %v671, 1
        %v692 = vpop.permute.xlu0 %691
        %693 = vrot.lane.b32.xlu0 %v672, 1
        %v694 = vpop.permute.xlu0 %693
        %695 = vrot.lane.b32.xlu0 %v673, 1
        %v696 = vpop.permute.xlu0 %695
        %697 = vrot.lane.b32.xlu0 %v674, 1
        %v698 = vpop.permute.xlu0 %697
        %v707 = vsub.f32 %v659, %v684
        %v708 = vsub.f32 %v660, %v686
        %v709 = vsub.f32 %v661, %v688
        %v710 = vsub.f32 %v662, %v690
        %v711 = vsub.f32 %v663, %v692
        %v712 = vsub.f32 %v664, %v694
        %v713 = vsub.f32 %v665, %v696
        %v714 = vsub.f32 %v666, %v698
        %v715 = vand.u32 2147483647, %v707
        %v716 = vand.u32 2147483647, %v708
        %v717 = vand.u32 2147483647, %v709
        %v718 = vand.u32 2147483647, %v710
        %v719 = vand.u32 2147483647, %v711
        %v720 = vand.u32 2147483647, %v712
        %v721 = vand.u32 2147483647, %v713
        %v722 = vand.u32 2147483647, %v714
        %v723 = vsel %vm470, %v715, 0.0
        %v724 = vsel %vm470, %v717, 0.0
        %v725 = vadd.f32 %v723, %v724
        %v726 = vsel %vm470, %v719, 0.0
        %v727 = vadd.f32 %v725, %v726
        %v728 = vsel %vm470, %v721, 0.0
        %v729 = vadd.f32 %v727, %v728
        %v730 = vsel %vm470, %v716, 0.0
        %v731 = vsel %vm470, %v718, 0.0
        %v732 = vadd.f32 %v730, %v731
        %v733 = vsel %vm470, %v720, 0.0
        %v734 = vadd.f32 %v732, %v733
        %v735 = vsel %vm470, %v722, 0.0
        %v736 = vadd.f32 %v734, %v735
        %v737 = vsel %vm470, %v729, 0.0
        %v738 = vsel %vm470, %v736, 0.0
        %v739 = vadd.f32 %v737, %v738
        %v740 = vrot.slane %v739, 4
        %v741 = vadd.f32 %v739, %v740
        %v742 = vrot.slane %v741, 2
        %v743 = vadd.f32 %v741, %v742
        %v744 = vrot.slane %v743, 1
        %v745 = vadd.f32 %v743, %v744
        %747 = vrot.lane.b32.xlu0 %v745, 127
        %v748 = vpop.permute.xlu0 %747
        %v750 = vsel %vm311, %v748, 0.0
        %751 = vadd.xlane.f32.xlu0 %v750
        %v752 = vpop.xlane.xlu0 %751
        %v753 = vld [vmem:[#allocation2 + $0x5] sm:$0x1]
        %v754 = vadd.f32 %v753, %v752
        %755 = vst.msk [vmem:[#allocation2 + $0x5] sm:$0x1] %vm341, %v754
        %v756 = vld [vmem:[%s201 + $0x1] sm:$0xff]
        %v757 = vld [vmem:[%s201 + $0x9] sm:$0x7f]
        %v758 = vld [vmem:[%s201 + $0x11] sm:$0xff]
        %v759 = vld [vmem:[%s201 + $0x19] sm:$0x7f]
        %v760 = vld [vmem:[%s201 + $0x21] sm:$0xff]
        %v761 = vld [vmem:[%s201 + $0x29] sm:$0x7f]
        %v762 = vld [vmem:[%s201 + $0x31] sm:$0xff]
        %v763 = vld [vmem:[%s201 + $0x39] sm:$0x7f]
        %v764 = vld [vmem:[%s191] sm:$0xff]
        %v765 = vld [vmem:[%s191 + $0x8] sm:$0x7f]
        %v766 = vld [vmem:[%s191 + $0x10] sm:$0xff]
        %v767 = vld [vmem:[%s191 + $0x18] sm:$0x7f]
        %v768 = vld [vmem:[%s191 + $0x20] sm:$0xff]
        %v769 = vld [vmem:[%s191 + $0x28] sm:$0x7f]
        %v770 = vld [vmem:[%s191 + $0x30] sm:$0xff]
        %v771 = vld [vmem:[%s191 + $0x38] sm:$0x7f]
        %780 = vrot.lane.b32.xlu0 %v764, 127
        %v781 = vpop.permute.xlu0 %780
        %782 = vrot.lane.b32.xlu0 %v765, 127
        %v783 = vpop.permute.xlu0 %782
        %784 = vrot.lane.b32.xlu0 %v766, 127
        %v785 = vpop.permute.xlu0 %784
        %786 = vrot.lane.b32.xlu0 %v767, 127
        %v787 = vpop.permute.xlu0 %786
        %788 = vrot.lane.b32.xlu0 %v768, 127
        %v789 = vpop.permute.xlu0 %788
        %790 = vrot.lane.b32.xlu0 %v769, 127
        %v791 = vpop.permute.xlu0 %790
        %792 = vrot.lane.b32.xlu0 %v770, 127
        %v793 = vpop.permute.xlu0 %792
        %794 = vrot.lane.b32.xlu0 %v771, 127
        %v795 = vpop.permute.xlu0 %794
        %v804 = vsub.f32 %v756, %v781
        %v805 = vsub.f32 %v757, %v783
        %v806 = vsub.f32 %v758, %v785
        %v807 = vsub.f32 %v759, %v787
        %v808 = vsub.f32 %v760, %v789
        %v809 = vsub.f32 %v761, %v791
        %v810 = vsub.f32 %v762, %v793
        %v811 = vsub.f32 %v763, %v795
        %v812 = vand.u32 2147483647, %v804
        %v813 = vand.u32 2147483647, %v805
        %v814 = vand.u32 2147483647, %v806
        %v815 = vand.u32 2147483647, %v807
        %v816 = vand.u32 2147483647, %v808
        %v817 = vand.u32 2147483647, %v809
        %v818 = vand.u32 2147483647, %v810
        %v819 = vand.u32 2147483647, %v811
        %v820 = vsel %vm311, %v812, 0.0
        %v821 = vsel %vm311, %v814, 0.0
        %v822 = vadd.f32 %v820, %v821
        %v823 = vsel %vm311, %v816, 0.0
        %v824 = vadd.f32 %v822, %v823
        %v825 = vsel %vm311, %v818, 0.0
        %v826 = vadd.f32 %v824, %v825
        %v827 = vsel %vm319, %v813, 0.0
        %v828 = vsel %vm319, %v815, 0.0
        %v829 = vadd.f32 %v827, %v828
        %v830 = vsel %vm319, %v817, 0.0
        %v831 = vadd.f32 %v829, %v830
        %v832 = vsel %vm319, %v819, 0.0
        %v833 = vadd.f32 %v831, %v832
        %v834 = vsel %vm311, %v826, 0.0
        %v835 = vsel %vm319, %v833, 0.0
        %v836 = vadd.f32 %v834, %v835
        %v837 = vrot.slane %v836, 4
        %v838 = vadd.f32 %v836, %v837
        %v839 = vrot.slane %v838, 2
        %v840 = vadd.f32 %v838, %v839
        %v841 = vrot.slane %v840, 1
        %v842 = vadd.f32 %v840, %v841
        %v843 = vsel %vm311, %v842, 0.0
        %844 = vadd.xlane.f32.xlu0 %v843
        %v845 = vpop.xlane.xlu0 %844
        %v846 = vld [vmem:[#allocation2 + $0x6] sm:$0x1]
        %v847 = vadd.f32 %v846, %v845
        %848 = vst.msk [vmem:[#allocation2 + $0x6] sm:$0x1] %vm341, %v847
        %v849 = vld [vmem:[%s201 + $0x1] sm:$0xff]
        %v850 = vld [vmem:[%s201 + $0x9] sm:$0x7f]
        %v851 = vld [vmem:[%s201 + $0x11] sm:$0xff]
        %v852 = vld [vmem:[%s201 + $0x19] sm:$0x7f]
        %v853 = vld [vmem:[%s201 + $0x21] sm:$0xff]
        %v854 = vld [vmem:[%s201 + $0x29] sm:$0x7f]
        %v855 = vld [vmem:[%s201 + $0x31] sm:$0xff]
        %v856 = vld [vmem:[%s201 + $0x39] sm:$0x7f]
        %v857 = vld [vmem:[%s191] sm:$0xff]
        %v858 = vld [vmem:[%s191 + $0x8] sm:$0x7f]
        %v859 = vld [vmem:[%s191 + $0x10] sm:$0xff]
        %v860 = vld [vmem:[%s191 + $0x18] sm:$0x7f]
        %v861 = vld [vmem:[%s191 + $0x20] sm:$0xff]
        %v862 = vld [vmem:[%s191 + $0x28] sm:$0x7f]
        %v863 = vld [vmem:[%s191 + $0x30] sm:$0xff]
        %v864 = vld [vmem:[%s191 + $0x38] sm:$0x7f]
        %v865 = vsub.f32 %v849, %v857
        %v866 = vsub.f32 %v850, %v858
        %v867 = vsub.f32 %v851, %v859
        %v868 = vsub.f32 %v852, %v860
        %v869 = vsub.f32 %v853, %v861
        %v870 = vsub.f32 %v854, %v862
        %v871 = vsub.f32 %v855, %v863
        %v872 = vsub.f32 %v856, %v864
        %v873 = vand.u32 2147483647, %v865
        %v874 = vand.u32 2147483647, %v866
        %v875 = vand.u32 2147483647, %v867
        %v876 = vand.u32 2147483647, %v868
        %v877 = vand.u32 2147483647, %v869
        %v878 = vand.u32 2147483647, %v870
        %v879 = vand.u32 2147483647, %v871
        %v880 = vand.u32 2147483647, %v872
        %v881 = vsel %vm375, %v873, 0.0
        %v882 = vsel %vm375, %v875, 0.0
        %v883 = vadd.f32 %v881, %v882
        %v884 = vsel %vm375, %v877, 0.0
        %v885 = vadd.f32 %v883, %v884
        %v886 = vsel %vm375, %v879, 0.0
        %v887 = vadd.f32 %v885, %v886
        %v888 = vsel %vm383, %v874, 0.0
        %v889 = vsel %vm383, %v876, 0.0
        %v890 = vadd.f32 %v888, %v889
        %v891 = vsel %vm383, %v878, 0.0
        %v892 = vadd.f32 %v890, %v891
        %v893 = vsel %vm383, %v880, 0.0
        %v894 = vadd.f32 %v892, %v893
        %v895 = vsel %vm375, %v887, 0.0
        %v896 = vsel %vm383, %v894, 0.0
        %v897 = vadd.f32 %v895, %v896
        %v898 = vrot.slane %v897, 4
        %v899 = vadd.f32 %v897, %v898
        %v900 = vrot.slane %v899, 2
        %v901 = vadd.f32 %v899, %v900
        %v902 = vrot.slane %v901, 1
        %v903 = vadd.f32 %v901, %v902
        %v904 = vsel %vm375, %v903, 0.0
        %905 = vadd.xlane.f32.xlu0 %v904
        %v906 = vpop.xlane.xlu0 %905
        %v907 = vld [vmem:[#allocation2 + $0x7] sm:$0x1]
        %v908 = vadd.f32 %v907, %v906
        %909 = vst.msk [vmem:[#allocation2 + $0x7] sm:$0x1] %vm341, %v908
        %v910 = vld [vmem:[%s201 + $0x1] sm:$0xff]
        %v911 = vld [vmem:[%s201 + $0x9] sm:$0x7f]
        %v912 = vld [vmem:[%s201 + $0x11] sm:$0xff]
        %v913 = vld [vmem:[%s201 + $0x19] sm:$0x7f]
        %v914 = vld [vmem:[%s201 + $0x21] sm:$0xff]
        %v915 = vld [vmem:[%s201 + $0x29] sm:$0x7f]
        %v916 = vld [vmem:[%s201 + $0x31] sm:$0xff]
        %v917 = vld [vmem:[%s201 + $0x39] sm:$0x7f]
        %v918 = vld [vmem:[%s191] sm:$0xff]
        %v919 = vld [vmem:[%s191 + $0x8] sm:$0x7f]
        %v920 = vld [vmem:[%s191 + $0x10] sm:$0xff]
        %v921 = vld [vmem:[%s191 + $0x18] sm:$0x7f]
        %v922 = vld [vmem:[%s191 + $0x20] sm:$0xff]
        %v923 = vld [vmem:[%s191 + $0x28] sm:$0x7f]
        %v924 = vld [vmem:[%s191 + $0x30] sm:$0xff]
        %v925 = vld [vmem:[%s191 + $0x38] sm:$0x7f]
        %934 = vrot.lane.b32.xlu0 %v918, 1
        %v935 = vpop.permute.xlu0 %934
        %936 = vrot.lane.b32.xlu0 %v919, 1
        %v937 = vpop.permute.xlu0 %936
        %938 = vrot.lane.b32.xlu0 %v920, 1
        %v939 = vpop.permute.xlu0 %938
        %940 = vrot.lane.b32.xlu0 %v921, 1
        %v941 = vpop.permute.xlu0 %940
        %942 = vrot.lane.b32.xlu0 %v922, 1
        %v943 = vpop.permute.xlu0 %942
        %944 = vrot.lane.b32.xlu0 %v923, 1
        %v945 = vpop.permute.xlu0 %944
        %946 = vrot.lane.b32.xlu0 %v924, 1
        %v947 = vpop.permute.xlu0 %946
        %948 = vrot.lane.b32.xlu0 %v925, 1
        %v949 = vpop.permute.xlu0 %948
        %v958 = vsub.f32 %v910, %v935
        %v959 = vsub.f32 %v911, %v937
        %v960 = vsub.f32 %v912, %v939
        %v961 = vsub.f32 %v913, %v941
        %v962 = vsub.f32 %v914, %v943
        %v963 = vsub.f32 %v915, %v945
        %v964 = vsub.f32 %v916, %v947
        %v965 = vsub.f32 %v917, %v949
        %v966 = vand.u32 2147483647, %v958
        %v967 = vand.u32 2147483647, %v959
        %v968 = vand.u32 2147483647, %v960
        %v969 = vand.u32 2147483647, %v961
        %v970 = vand.u32 2147483647, %v962
        %v971 = vand.u32 2147483647, %v963
        %v972 = vand.u32 2147483647, %v964
        %v973 = vand.u32 2147483647, %v965
        %v974 = vsel %vm470, %v966, 0.0
        %v975 = vsel %vm470, %v968, 0.0
        %v976 = vadd.f32 %v974, %v975
        %v977 = vsel %vm470, %v970, 0.0
        %v978 = vadd.f32 %v976, %v977
        %v979 = vsel %vm470, %v972, 0.0
        %v980 = vadd.f32 %v978, %v979
        %v981 = vsel %vm478, %v967, 0.0
        %v982 = vsel %vm478, %v969, 0.0
        %v983 = vadd.f32 %v981, %v982
        %v984 = vsel %vm478, %v971, 0.0
        %v985 = vadd.f32 %v983, %v984
        %v986 = vsel %vm478, %v973, 0.0
        %v987 = vadd.f32 %v985, %v986
        %v988 = vsel %vm470, %v980, 0.0
        %v989 = vsel %vm478, %v987, 0.0
        %v990 = vadd.f32 %v988, %v989
        %v991 = vrot.slane %v990, 4
        %v992 = vadd.f32 %v990, %v991
        %v993 = vrot.slane %v992, 2
        %v994 = vadd.f32 %v992, %v993
        %v995 = vrot.slane %v994, 1
        %v996 = vadd.f32 %v994, %v995
        %998 = vrot.lane.b32.xlu0 %v996, 127
        %v999 = vpop.permute.xlu0 %998
        %v1001 = vsel %vm311, %v999, 0.0
        %1002 = vadd.xlane.f32.xlu0 %v1001
        %v1003 = vpop.xlane.xlu0 %1002
        %v1004 = vld [vmem:[#allocation2 + $0x8] sm:$0x1]
        %v1005 = vadd.f32 %v1004, %v1003
        %1006 = vst.msk [vmem:[#allocation2 + $0x8] sm:$0x1] %vm341, %v1005
        // Predicated region
        $region41: #{tpu_custom_call.1} parent=27 // pred_check
          %p1007 = pneg %p230
        $region42: #{tpu_custom_call.1} parent=27 // pred_check_branch
          %1009 = sbr.rel (%p1007) target = $region44
        $region43: #{tpu_custom_call.1} parent=27 // pred_region
          %v1010 = vld [vmem:[#allocation2] sm:$0xff]
          %v1011 = vld [vmem:[#allocation2 + $0x8] sm:$0x1]
          %v1012 = vld [vmem:[#allocation3] sm:$0xff]
          %v1013 = vld [vmem:[#allocation3 + $0x8] sm:$0x1]
          %v1014 = vmax.f32 %v1012, 1.0
          %v1015 = vmax.f32 %v1013, 1.0
          %v1016 = vrcp.pop %v1014
          %v1017 = vmul.f32 %v1014, %v1016
          %v1018 = vsub.f32 1.0, %v1017
          %v1019 = vmul.f32 %v1016, %v1018
          %v1020 = vadd.f32 %v1016, %v1019
          %vm1021 = vweird.f32 %v1014
          %vm1022 = vweird.f32 %v1016
          %vm1023 = vmor %vm1021, %vm1022
          %v1024 = vsel %vm1023, %v1016, %v1020
          %v1025 = vand.u32 2147483647, %v1014
          %vm1026 = vcmp.eq.f32.partialorder %v1025, 8.507059e+37
          %v1027 = vand.u32 %v1014, 2147483648
          %v1028 = vor.u32 1.1754944e-38, %v1027
          %v1029 = vsel %vm1026, %v1028, %v1024
          %v1030 = vmul.f32 %v1010, %v1029
          %v1031 = vrcp.pop %v1015
          %v1032 = vmul.f32 %v1015, %v1031
          %v1033 = vsub.f32 1.0, %v1032
          %v1034 = vmul.f32 %v1031, %v1033
          %v1035 = vadd.f32 %v1031, %v1034
          %vm1036 = vweird.f32 %v1015
          %vm1037 = vweird.f32 %v1031
          %vm1038 = vmor %vm1036, %vm1037
          %v1039 = vsel %vm1038, %v1031, %v1035
          %v1040 = vand.u32 2147483647, %v1015
          %vm1041 = vcmp.eq.f32.partialorder %v1040, 8.507059e+37
          %v1042 = vand.u32 %v1015, 2147483648
          %v1043 = vor.u32 1.1754944e-38, %v1042
          %v1044 = vsel %vm1041, %v1043, %v1039
          %v1045 = vmul.f32 %v1011, %v1044
          %vm1046 = vcmp.ge.f32.partialorder %v1012, 5.0
          %vm1047 = vcmp.ge.f32.partialorder %v1013, 5.0
          %v1048 = vsel %vm1046, %v1030, 1e+30
          %v1049 = vsel %vm1047, %v1045, 1e+30
          %vm1050 = vcmask 7168
          %v1051 = vsel %vm1050, %v1048, inf
          %v1052 = vsel %vm341, %v1049, inf
          %v1053 = vmin.f32 %v1051, %v1052
          %v1054 = vrot.slane %v1053, 4
          %v1055 = vmin.f32 %v1053, %v1054
          %v1056 = vrot.slane %v1055, 2
          %v1057 = vmin.f32 %v1055, %v1056
          %v1058 = vrot.slane %v1057, 1
          %v1059 = vmin.f32 %v1057, %v1058
          %vm1060 = vcmp.lt.f32.partialorder %v1059, 5e+29
          %v1061 = vsel %vm1060, %v1059, 0.0
          %1063 = vset.pattern.permute.xlu0 0
          %1064 = vperm.xlu0 %1063, %v1061
          %v1065 = vpop.permute.xlu0 %1064
          %v1067 = vadd.f32 %v1065, 0.0
          %1068 = vst [vmem:[%s227] sm:$0xff] %v1067
        $region44: #{tpu_custom_call.1} parent=27 // pred_fallthru
          _
        %s1069 = sand.u32 %s98, 1
        %s1070 = scalar_lea.sflag [#allocation6], %s1069
        %s1071 = sand.u32 %s98, 1
        %s1072 = smul.addr %s1071, 8
        %s1073 = scalar_lea.vmem [#allocation9], %s1072
        // Predicated region
        $region45: #{tpu_custom_call.1} parent=27 // pred_check
          %p1074 = pneg %p108
        $region46: #{tpu_custom_call.1} parent=27 // pred_check_branch
          %1076 = sbr.rel (%p1074) target = $region48
        $region47: #{tpu_custom_call.1} parent=27 // pred_region
          %1078 = vsyncadd %s1070, 0
          %s1079 = smul.addr %s26, 8
          %s1080 = scalar_lea.hbm %s2, %s1079
          %s1082 = sshll.u32 %s1073, 4
          %s1083 = int_to_ptr.vmem [resolvable:$true] %s1082
          %s1084 = sshll.u32 %s1080, 4
          %s1085 = int_to_ptr.hbm [resolvable:$true] %s1084
          %1087 = dma.vmem_to_hbm [thread:$0]  %s1083, 128, %s1085, %s1070
        $region48: #{tpu_custom_call.1} parent=27 // pred_fallthru
          _
      $region28: #{tpu_custom_call.1} parent=5 // pred_fallthru
        _
      %p1088 = scmp.le.s32.totalorder 2, %s17
      // Predicated region
      $region49: #{tpu_custom_call.1} parent=5 // pred_check
        %p1089 = pneg %p1088
      $region50: #{tpu_custom_call.1} parent=5 // pred_check_branch
        %1091 = sbr.rel (%p1089) target = $region52
      $region51: #{tpu_custom_call.1} parent=5 // pred_region
        %s1092 = ssub.s32 %s17, 2
        // Predicated region
        $region53: #{tpu_custom_call.1} parent=51 // pred_check
          %p1093 = pneg %p114
        $region54: #{tpu_custom_call.1} parent=51 // pred_check_branch
          %1095 = sbr.rel (%p1093) target = $region56
        $region55: #{tpu_custom_call.1} parent=51 // pred_region
          %s1096 = sand.u32 %s99, 1
          %s1097 = scalar_lea.sflag [#allocation6], %s1096
          %s1098 = sand.u32 %s99, 1
          %s1099 = smul.addr %s1098, 8
          %s1100 = scalar_lea.vmem [#allocation9], %s1099
          %1102 = dma.done %s1097, 128
        $region56: #{tpu_custom_call.1} parent=51 // pred_fallthru
          _
      $region52: #{tpu_custom_call.1} parent=5 // pred_fallthru
        _
    $region6: #{tpu_custom_call.1} parent=1 // loop_footer
      %s21 = sadd.s32 1, %s17
    $region7: #{tpu_custom_call.1} parent=1 // loop_footer_branch
      %16 = sbr.rel target = $region3
    $region8: #{tpu_custom_call.1} parent=1 // loop_exit
      _
    %1103 = vsyncpa [#allocation5], 1
    %s1104 = scalar_lea.sflag [#allocation5], 1
    %1105 = vsyncpa %s1104, 1
    %1106 = vsyncpa [#allocation8], 1
    %s1107 = scalar_lea.sflag [#allocation8], 1
    %1108 = vsyncpa %s1107, 1
    %1109 = vsyncpa [#allocation6], 1
    %s1110 = scalar_lea.sflag [#allocation6], 1
    %1111 = vsyncpa %s1110, 1

</llo_original>
